<compile_context>
chip_gen: v7x
topology: tpu7x:2x2x1
jax: 0.10.0
libtpu: 0.0.40
codegen_flags: <defaults>
</compile_context>

<pallas_src>
import functools

import jax
import jax.numpy as jnp
from jax.experimental import pallas as pl
from jax.experimental.pallas import tpu as pltpu

# Logical dims (PyTorch module) and lane-padded dims.
D_IN, H1, H2, H3, D_OUT = 784, 512, 256, 64, 10
D_IN_P = 896    # 7 * 128
H3_P = 128
D_OUT_P = 128
_NEG = -1e30    # baked into padded fc4 bias columns


def _mlp_kernel(x_ref, w1_ref, b1_ref, w2_ref, b2_ref,
                w3_ref, b3_ref, w4_ref, b4_ref, o_ref):
    # fc1 + relu   (K = 896, lane aligned)
    h = jnp.dot(x_ref[...], w1_ref[...], preferred_element_type=jnp.float32)
    h = jnp.maximum(h + b1_ref[...], 0.0)
    # fc2 + relu
    h = jnp.dot(h, w2_ref[...], preferred_element_type=jnp.float32)
    h = jnp.maximum(h + b2_ref[...], 0.0)
    # fc3 + relu   (padded to 128 wide; padded cols stay exactly 0 after relu)
    h = jnp.dot(h, w3_ref[...], preferred_element_type=jnp.float32)
    h = jnp.maximum(h + b3_ref[...], 0.0)
    # fc4 (logits, padded to 128 wide).  Padded weight cols are 0 and padded bias
    # cols are -1e30, so padded logits are already ~ -inf: no in-kernel masking.
    logits = jnp.dot(h, w4_ref[...], preferred_element_type=jnp.float32)
    logits = logits + b4_ref[...]
    # log_softmax along the class axis (padded cols contribute exp(-huge) == 0).
    m = jnp.max(logits, axis=-1, keepdims=True)
    shifted = logits - m
    lse = jnp.log(jnp.sum(jnp.exp(shifted), axis=-1, keepdims=True))
    o_ref[...] = (shifted - lse).astype(o_ref.dtype)


def _round_up(n, m):
    return ((n + m - 1) // m) * m


@functools.partial(jax.jit, static_argnames=("tile_b",))
def classifier_forward(x, params, tile_b=None):
    """x: (B, 1, 28, 28) float32.  Returns (B, 10) log-probabilities."""
    B = x.shape[0]
    x2d = x.reshape(B, -1).astype(jnp.float32)          # == torch x.view(B, -1)
    x2d = jnp.pad(x2d, ((0, 0), (0, D_IN_P - D_IN)))    # 784 -> 896

    (w1, b1), (w2, b2), (w3, b3), (w4, b4) = params
    # Zero-pad weights / biases to lane-aligned shapes (exact-equivalent math).
    w1p = jnp.pad(w1, ((0, D_IN_P - D_IN), (0, 0)))
    w3p = jnp.pad(w3, ((0, 0), (0, H3_P - H3)))
    b3p = jnp.pad(b3, ((0, 0), (0, H3_P - H3)))
    w4p = jnp.pad(w4, ((0, H3_P - H3), (0, D_OUT_P - D_OUT)))
    # Padded bias columns get -1e30 so padded logits are pre-masked.
    b4p = jnp.pad(b4, ((0, 0), (0, D_OUT_P - D_OUT)), constant_values=_NEG)

    # Batch tiling: 256 rows/tile at large B (MXU M alignment); round small B
    # up to a multiple of 8 (sublane) and run a single grid step.
    if tile_b is None:
        tile_b = 256 if B >= 256 else max(8, _round_up(B, 8))
    B_p = _round_up(B, tile_b)
    if B_p != B:
        x2d = jnp.pad(x2d, ((0, B_p - B), (0, 0)))
    grid = (pl.cdiv(B_p, tile_b),)

    def resident(shape):
        nd = len(shape)
        return pl.BlockSpec(shape, lambda i, _nd=nd: (0,) * _nd)

    out = pl.pallas_call(
        _mlp_kernel,
        out_shape=jax.ShapeDtypeStruct((B_p, D_OUT_P), jnp.float32),
        grid=grid,
        in_specs=[
            pl.BlockSpec((tile_b, D_IN_P), lambda i: (i, 0)),     # x tiles
            resident((D_IN_P, H1)),    resident((1, H1)),          # fc1
            resident((H1, H2)),        resident((1, H2)),          # fc2
            resident((H2, H3_P)),      resident((1, H3_P)),        # fc3 (padded)
            resident((H3_P, D_OUT_P)), resident((1, D_OUT_P)),     # fc4 (padded)
        ],
        out_specs=pl.BlockSpec((tile_b, D_OUT_P), lambda i: (i, 0)),
        compiler_params=pltpu.CompilerParams(
            dimension_semantics=("parallel",)),
    )(x2d, w1p, b1, w2, b2, w3p, b3p, w4p, b4p)

    return out[:B, :D_OUT]


def init_params(key):
    """Deterministic init mirroring nn.Linear shapes.
    Stored as (W_T: (in, out), b: (1, out)); padding is done in the wrapper."""
    dims = [(D_IN, H1), (H1, H2), (H2, H3), (H3, D_OUT)]
    params = []
    for i, (fan_in, fan_out) in enumerate(dims):
        kw, kb = jax.random.split(jax.random.fold_in(key, i))
        bound = 1.0 / (fan_in ** 0.5)
        w = jax.random.uniform(kw, (fan_in, fan_out), jnp.float32, -bound, bound)
        b = jax.random.uniform(kb, (1, fan_out), jnp.float32, -bound, bound)
        params.append((w, b))
    return params


def _reference_forward(x, params):
    """Pure-JAX reference for correctness check (matches the PyTorch module)."""
    h = x.reshape(x.shape[0], -1)
    (w1, b1), (w2, b2), (w3, b3), (w4, b4) = params
    h = jax.nn.relu(h @ w1 + b1)
    h = jax.nn.relu(h @ w2 + b2)
    h = jax.nn.relu(h @ w3 + b3)
    logits = h @ w4 + b4
    return jax.nn.log_softmax(logits, axis=1)


if __name__ == "__main__":
    key = jax.random.PRNGKey(0)
    kx, kp = jax.random.split(key)
    params = init_params(kp)

    # Small batch, shapes implied by the module (784 = 1*28*28).
    x = jax.random.normal(kx, (8, 1, 28, 28), jnp.float32)
    out = jax.block_until_ready(classifier_forward(x, params))
    ref = _reference_forward(x, params)
    assert out.shape == (8, 10)
    assert jnp.allclose(out, ref, atol=1e-4, rtol=1e-4), "mismatch vs reference (B=8)"

    # Exercise the batch grid (multiple tiles + batch padding) at a small size.
    x2 = jax.random.normal(jax.random.fold_in(kx, 1), (20, 1, 28, 28), jnp.float32)
    out2 = jax.block_until_ready(classifier_forward(x2, params, tile_b=8))
    ref2 = _reference_forward(x2, params)
    assert out2.shape == (20, 10)
    assert jnp.allclose(out2, ref2, atol=1e-4, rtol=1e-4), "mismatch vs reference (B=20)"

    print("KERNEL_OK")
</pallas_src>

<mosaic_0001>
module attributes {stable_mosaic.version = 11 : i64} {
  func.func @_mlp_kernel(%arg0: i32, %arg1: memref<8x896xf32, #tpu.memory_space<vmem>>, %arg2: memref<896x512xf32, #tpu.memory_space<vmem>>, %arg3: memref<1x512xf32, #tpu.memory_space<vmem>>, %arg4: memref<512x256xf32, #tpu.memory_space<vmem>>, %arg5: memref<1x256xf32, #tpu.memory_space<vmem>>, %arg6: memref<256x128xf32, #tpu.memory_space<vmem>>, %arg7: memref<1x128xf32, #tpu.memory_space<vmem>>, %arg8: memref<128x128xf32, #tpu.memory_space<vmem>>, %arg9: memref<1x128xf32, #tpu.memory_space<vmem>>, %arg10: memref<8x128xf32, #tpu.memory_space<vmem>>) attributes {dimension_semantics = [#tpu.dimension_semantics<parallel>], iteration_bounds = array<i64: 1>, scalar_prefetch = 0 : i64, scratch_operands = 0 : i64, tpu.core_type = #tpu.core_type<tc>, window_params = [{transform_indices = @transform_0, window_bounds = array<i64: 8, 896>}, {pipeline_mode = #tpu.pipeline_mode<synchronous>, transform_indices = @transform_1, window_bounds = array<i64: 896, 512>}, {pipeline_mode = #tpu.pipeline_mode<synchronous>, transform_indices = @transform_2, window_bounds = array<i64: 1, 512>}, {pipeline_mode = #tpu.pipeline_mode<synchronous>, transform_indices = @transform_3, window_bounds = array<i64: 512, 256>}, {pipeline_mode = #tpu.pipeline_mode<synchronous>, transform_indices = @transform_4, window_bounds = array<i64: 1, 256>}, {pipeline_mode = #tpu.pipeline_mode<synchronous>, transform_indices = @transform_5, window_bounds = array<i64: 256, 128>}, {pipeline_mode = #tpu.pipeline_mode<synchronous>, transform_indices = @transform_6, window_bounds = array<i64: 1, 128>}, {pipeline_mode = #tpu.pipeline_mode<synchronous>, transform_indices = @transform_7, window_bounds = array<i64: 128, 128>}, {pipeline_mode = #tpu.pipeline_mode<synchronous>, transform_indices = @transform_8, window_bounds = array<i64: 1, 128>}, {transform_indices = @transform_9, window_bounds = array<i64: 8, 128>}]} {
    %c0 = arith.constant 0 : index
    %c0_0 = arith.constant 0 : index
    %0 = vector.load %arg1[%c0, %c0_0] : memref<8x896xf32, #tpu.memory_space<vmem>>, vector<8x896xf32>
    %c0_1 = arith.constant 0 : index
    %c0_2 = arith.constant 0 : index
    %1 = vector.load %arg2[%c0_1, %c0_2] : memref<896x512xf32, #tpu.memory_space<vmem>>, vector<896x512xf32>
    %cst = arith.constant dense<0.000000e+00> : vector<8x512xf32>
    %2 = tpu.matmul %0, %1, %cst {dimension_numbers = #tpu.dot_dimension_numbers<[1], [0], [0], [1], [0, 0, 1, 1], [], []>} : vector<8x896xf32>, vector<896x512xf32>, vector<8x512xf32> -> vector<8x512xf32>
    %c0_3 = arith.constant 0 : index
    %c0_4 = arith.constant 0 : index
    %3 = vector.load %arg3[%c0_3, %c0_4] : memref<1x512xf32, #tpu.memory_space<vmem>>, vector<1x512xf32>
    %4 = vector.broadcast %3 : vector<1x512xf32> to vector<8x512xf32>
    %5 = arith.addf %2, %4 : vector<8x512xf32>
    %cst_5 = arith.constant 0.000000e+00 : f32
    %6 = vector.broadcast %cst_5 : f32 to vector<8x512xf32>
    %7 = arith.maximumf %5, %6 : vector<8x512xf32>
    %c0_6 = arith.constant 0 : index
    %c0_7 = arith.constant 0 : index
    %8 = vector.load %arg4[%c0_6, %c0_7] : memref<512x256xf32, #tpu.memory_space<vmem>>, vector<512x256xf32>
    %cst_8 = arith.constant dense<0.000000e+00> : vector<8x256xf32>
    %9 = tpu.matmul %7, %8, %cst_8 {dimension_numbers = #tpu.dot_dimension_numbers<[1], [0], [0], [1], [0, 0, 1, 1], [], []>} : vector<8x512xf32>, vector<512x256xf32>, vector<8x256xf32> -> vector<8x256xf32>
    %c0_9 = arith.constant 0 : index
    %c0_10 = arith.constant 0 : index
    %10 = vector.load %arg5[%c0_9, %c0_10] : memref<1x256xf32, #tpu.memory_space<vmem>>, vector<1x256xf32>
    %11 = vector.broadcast %10 : vector<1x256xf32> to vector<8x256xf32>
    %12 = arith.addf %9, %11 : vector<8x256xf32>
    %cst_11 = arith.constant 0.000000e+00 : f32
    %13 = vector.broadcast %cst_11 : f32 to vector<8x256xf32>
    %14 = arith.maximumf %12, %13 : vector<8x256xf32>
    %c0_12 = arith.constant 0 : index
    %c0_13 = arith.constant 0 : index
    %15 = vector.load %arg6[%c0_12, %c0_13] : memref<256x128xf32, #tpu.memory_space<vmem>>, vector<256x128xf32>
    %cst_14 = arith.constant dense<0.000000e+00> : vector<8x128xf32>
    %16 = tpu.matmul %14, %15, %cst_14 {dimension_numbers = #tpu.dot_dimension_numbers<[1], [0], [0], [1], [0, 0, 1, 1], [], []>} : vector<8x256xf32>, vector<256x128xf32>, vector<8x128xf32> -> vector<8x128xf32>
    %c0_15 = arith.constant 0 : index
    %c0_16 = arith.constant 0 : index
    %17 = vector.load %arg7[%c0_15, %c0_16] : memref<1x128xf32, #tpu.memory_space<vmem>>, vector<1x128xf32>
    %18 = vector.broadcast %17 : vector<1x128xf32> to vector<8x128xf32>
    %19 = arith.addf %16, %18 : vector<8x128xf32>
    %cst_17 = arith.constant 0.000000e+00 : f32
    %20 = vector.broadcast %cst_17 : f32 to vector<8x128xf32>
    %21 = arith.maximumf %19, %20 : vector<8x128xf32>
    %c0_18 = arith.constant 0 : index
    %c0_19 = arith.constant 0 : index
    %22 = vector.load %arg8[%c0_18, %c0_19] : memref<128x128xf32, #tpu.memory_space<vmem>>, vector<128x128xf32>
    %cst_20 = arith.constant dense<0.000000e+00> : vector<8x128xf32>
    %23 = tpu.matmul %21, %22, %cst_20 {dimension_numbers = #tpu.dot_dimension_numbers<[1], [0], [0], [1], [0, 0, 1, 1], [], []>} : vector<8x128xf32>, vector<128x128xf32>, vector<8x128xf32> -> vector<8x128xf32>
    %c0_21 = arith.constant 0 : index
    %c0_22 = arith.constant 0 : index
    %24 = vector.load %arg9[%c0_21, %c0_22] : memref<1x128xf32, #tpu.memory_space<vmem>>, vector<1x128xf32>
    %25 = vector.broadcast %24 : vector<1x128xf32> to vector<8x128xf32>
    %26 = arith.addf %23, %25 : vector<8x128xf32>
    %cst_23 = arith.constant dense<0xFF800000> : vector<8xf32>
    %27 = vector.multi_reduction <maximumf>, %26, %cst_23 [1] : vector<8x128xf32> to vector<8xf32>
    %28 = vector.shape_cast %27 : vector<8xf32> to vector<8x1xf32>
    %29 = vector.broadcast %28 : vector<8x1xf32> to vector<8x128xf32>
    %30 = arith.subf %26, %29 : vector<8x128xf32>
    %31 = math.exp %30 : vector<8x128xf32>
    %cst_24 = arith.constant dense<0.000000e+00> : vector<8xf32>
    %32 = vector.multi_reduction <add>, %31, %cst_24 [1] : vector<8x128xf32> to vector<8xf32>
    %33 = vector.shape_cast %32 : vector<8xf32> to vector<8x1xf32>
    %34 = math.log %33 : vector<8x1xf32>
    %35 = vector.broadcast %34 : vector<8x1xf32> to vector<8x128xf32>
    %36 = arith.subf %30, %35 : vector<8x128xf32>
    %c0_25 = arith.constant 0 : index
    %c0_26 = arith.constant 0 : index
    %37 = vector.load %arg10[%c0_25, %c0_26] : memref<8x128xf32, #tpu.memory_space<vmem>>, vector<8x128xf32>
    tpu.vector_store %arg10[%c0_25, %c0_26], %36 {strides = array<i32>} : memref<8x128xf32, #tpu.memory_space<vmem>>, vector<8x128xf32>,
    return
  }
  func.func @transform_0(%arg0: i32) -> (i32, i32) {
    %c0_i32 = arith.constant 0 : i32
    %c0_i32_0 = arith.constant 0 : i32
    return %arg0, %c0_i32 : i32, i32
  }
  func.func @transform_1(%arg0: i32) -> (i32, i32) {
    %c0_i32 = arith.constant 0 : i32
    %c0_i32_0 = arith.constant 0 : i32
    %c0_i32_1 = arith.constant 0 : i32
    return %c0_i32, %c0_i32_0 : i32, i32
  }
  func.func @transform_2(%arg0: i32) -> (i32, i32) {
    %c0_i32 = arith.constant 0 : i32
    %c0_i32_0 = arith.constant 0 : i32
    %c0_i32_1 = arith.constant 0 : i32
    return %c0_i32, %c0_i32_0 : i32, i32
  }
  func.func @transform_3(%arg0: i32) -> (i32, i32) {
    %c0_i32 = arith.constant 0 : i32
    %c0_i32_0 = arith.constant 0 : i32
    %c0_i32_1 = arith.constant 0 : i32
    return %c0_i32, %c0_i32_0 : i32, i32
  }
  func.func @transform_4(%arg0: i32) -> (i32, i32) {
    %c0_i32 = arith.constant 0 : i32
    %c0_i32_0 = arith.constant 0 : i32
    %c0_i32_1 = arith.constant 0 : i32
    return %c0_i32, %c0_i32_0 : i32, i32
  }
  func.func @transform_5(%arg0: i32) -> (i32, i32) {
    %c0_i32 = arith.constant 0 : i32
    %c0_i32_0 = arith.constant 0 : i32
    %c0_i32_1 = arith.constant 0 : i32
    return %c0_i32, %c0_i32_0 : i32, i32
  }
  func.func @transform_6(%arg0: i32) -> (i32, i32) {
    %c0_i32 = arith.constant 0 : i32
    %c0_i32_0 = arith.constant 0 : i32
    %c0_i32_1 = arith.constant 0 : i32
    return %c0_i32, %c0_i32_0 : i32, i32
  }
  func.func @transform_7(%arg0: i32) -> (i32, i32) {
    %c0_i32 = arith.constant 0 : i32
    %c0_i32_0 = arith.constant 0 : i32
    %c0_i32_1 = arith.constant 0 : i32
    return %c0_i32, %c0_i32_0 : i32, i32
  }
  func.func @transform_8(%arg0: i32) -> (i32, i32) {
    %c0_i32 = arith.constant 0 : i32
    %c0_i32_0 = arith.constant 0 : i32
    %c0_i32_1 = arith.constant 0 : i32
    return %c0_i32, %c0_i32_0 : i32, i32
  }
  func.func @transform_9(%arg0: i32) -> (i32, i32) {
    %c0_i32 = arith.constant 0 : i32
    %c0_i32_0 = arith.constant 0 : i32
    return %arg0, %c0_i32 : i32, i32
  }
}

</mosaic_0001>

<llo_original>
// kernel: classifier_forward.1
$region0: #{classifier_forward.1}
  #allocation0 [shape = 'u32[]', space=smem, size = 0x4, offset = 0x4, fixed_abs, tag = 'smem constant byte address 0x4 - core index']
  #allocation1 [shape = 'u32[144,128]{1,0:T(1,128)}', space=vmem, size = 0x12000, scoped, tag = 'internal scratch']
  %s0 = inlined_call_operand.vmem [shape: f32[8,896], index: 0, kind: input, shape index: {}]
  %s1 = inlined_call_operand.vmem [shape: f32[896,512], index: 1, kind: input, shape index: {}]
  %s2 = inlined_call_operand.vmem [shape: f32[1,512], index: 2, kind: input, shape index: {}]
  %s3 = inlined_call_operand.vmem [shape: f32[512,256], index: 3, kind: input, shape index: {}]
  %s4 = inlined_call_operand.vmem [shape: f32[1,256], index: 4, kind: input, shape index: {}]
  %s5 = inlined_call_operand.vmem [shape: f32[256,128], index: 5, kind: input, shape index: {}]
  %s6 = inlined_call_operand.vmem [shape: f32[1,128], index: 6, kind: input, shape index: {}]
  %s7 = inlined_call_operand.vmem [shape: f32[128,128], index: 7, kind: input, shape index: {}]
  %s8 = inlined_call_operand.vmem [shape: f32[1,128], index: 8, kind: input, shape index: {}]
  %s9 = inlined_call_operand.hbm [shape: f32[8,128], index: 9, kind: output, shape index: {}]
  %s10 = sld [smem:[#allocation0]]
  $region46: #{classifier_forward.1} parent=0
    _
  %s12 = ssub.s32 1, %s10
  %s13 = scalar_select 0, %s12, %s10
  $region1: #{classifier_forward.1} parent=0
    #allocation2 [shape = 'u8[4096]{0}', space=vmem, size = 0x1000, scoped, tag = 'output window, operand 0, single buffered']
    #allocation3 [shape = 's32[1]{0}', space=sflag, size = 0x4, scoped, tag = 'scoped memory for classifier_forward.1']
    %14 = vsyncpa [#allocation3], 0
    // Predicated region
    $region2: #{classifier_forward.1} parent=1 // pred_check
      _
    $region3: #{classifier_forward.1} parent=1 // pred_check_branch
      %16 = sbr.rel (0) target = $region5
    $region4: #{classifier_forward.1} parent=1 // pred_region
      _
    $region5: #{classifier_forward.1} parent=1 // pred_fallthru
      _
    // Predicated region
    $region6: #{classifier_forward.1} parent=1 // pred_check
      _
    $region7: #{classifier_forward.1} parent=1 // pred_check_branch
      %18 = sbr.rel (0) target = $region9
    $region8: #{classifier_forward.1} parent=1 // pred_region
      _
    $region9: #{classifier_forward.1} parent=1 // pred_fallthru
      _
    // Predicated region
    $region10: #{classifier_forward.1} parent=1 // pred_check
      _
    $region11: #{classifier_forward.1} parent=1 // pred_check_branch
      %20 = sbr.rel (0) target = $region13
    $region12: #{classifier_forward.1} parent=1 // pred_region
      _
    $region13: #{classifier_forward.1} parent=1 // pred_fallthru
      _
    // Predicated region
    $region14: #{classifier_forward.1} parent=1 // pred_check
      _
    $region15: #{classifier_forward.1} parent=1 // pred_check_branch
      %22 = sbr.rel (0) target = $region17
    $region16: #{classifier_forward.1} parent=1 // pred_region
      _
    $region17: #{classifier_forward.1} parent=1 // pred_fallthru
      _
    // Predicated region
    $region18: #{classifier_forward.1} parent=1 // pred_check
      _
    $region19: #{classifier_forward.1} parent=1 // pred_check_branch
      %24 = sbr.rel (0) target = $region21
    $region20: #{classifier_forward.1} parent=1 // pred_region
      _
    $region21: #{classifier_forward.1} parent=1 // pred_fallthru
      _
    // Predicated region
    $region22: #{classifier_forward.1} parent=1 // pred_check
      _
    $region23: #{classifier_forward.1} parent=1 // pred_check_branch
      %26 = sbr.rel (0) target = $region25
    $region24: #{classifier_forward.1} parent=1 // pred_region
      _
    $region25: #{classifier_forward.1} parent=1 // pred_fallthru
      _
    // Predicated region
    $region26: #{classifier_forward.1} parent=1 // pred_check
      _
    $region27: #{classifier_forward.1} parent=1 // pred_check_branch
      %28 = sbr.rel (0) target = $region29
    $region28: #{classifier_forward.1} parent=1 // pred_region
      _
    $region29: #{classifier_forward.1} parent=1 // pred_fallthru
      _
    // Predicated region
    $region30: #{classifier_forward.1} parent=1 // pred_check
      _
    $region31: #{classifier_forward.1} parent=1 // pred_check_branch
      %30 = sbr.rel (0) target = $region33
    $region32: #{classifier_forward.1} parent=1 // pred_region
      _
    $region33: #{classifier_forward.1} parent=1 // pred_fallthru
      _
    // Predicated region
    $region34: #{classifier_forward.1} parent=1 // pred_check
      _
    $region35: #{classifier_forward.1} parent=1 // pred_check_branch
      %32 = sbr.rel (0) target = $region37
    $region36: #{classifier_forward.1} parent=1 // pred_region
      _
    $region37: #{classifier_forward.1} parent=1 // pred_fallthru
      _
    %v33 = vld [vmem:[%s0] sm:$0xff]
    %v34 = vld [vmem:[%s0 + $0x8] sm:$0xff]
    %v35 = vld [vmem:[%s0 + $0x10] sm:$0xff]
    %v36 = vld [vmem:[%s0 + $0x18] sm:$0xff]
    %v37 = vld [vmem:[%s0 + $0x20] sm:$0xff]
    %v38 = vld [vmem:[%s0 + $0x28] sm:$0xff]
    %v39 = vld [vmem:[%s0 + $0x30] sm:$0xff]
    %v40 = vld [vmem:[%s1] sm:$0xff]
    %v41 = vld [vmem:[%s1 + $0x8] sm:$0xff]
    %v42 = vld [vmem:[%s1 + $0x10] sm:$0xff]
    %v43 = vld [vmem:[%s1 + $0x18] sm:$0xff]
    %v44 = vld [vmem:[%s1 + $0x20] sm:$0xff]
    %v45 = vld [vmem:[%s1 + $0x28] sm:$0xff]
    %v46 = vld [vmem:[%s1 + $0x30] sm:$0xff]
    %v47 = vld [vmem:[%s1 + $0x38] sm:$0xff]
    %v48 = vld [vmem:[%s1 + $0x40] sm:$0xff]
    %v49 = vld [vmem:[%s1 + $0x48] sm:$0xff]
    %v50 = vld [vmem:[%s1 + $0x50] sm:$0xff]
    %v51 = vld [vmem:[%s1 + $0x58] sm:$0xff]
    %v52 = vld [vmem:[%s1 + $0x60] sm:$0xff]
    %v53 = vld [vmem:[%s1 + $0x68] sm:$0xff]
    %v54 = vld [vmem:[%s1 + $0x70] sm:$0xff]
    %v55 = vld [vmem:[%s1 + $0x78] sm:$0xff]
    %v56 = vld [vmem:[%s1 + $0x80] sm:$0xff]
    %v57 = vld [vmem:[%s1 + $0x88] sm:$0xff]
    %v58 = vld [vmem:[%s1 + $0x90] sm:$0xff]
    %v59 = vld [vmem:[%s1 + $0x98] sm:$0xff]
    %v60 = vld [vmem:[%s1 + $0xa0] sm:$0xff]
    %v61 = vld [vmem:[%s1 + $0xa8] sm:$0xff]
    %v62 = vld [vmem:[%s1 + $0xb0] sm:$0xff]
    %v63 = vld [vmem:[%s1 + $0xb8] sm:$0xff]
    %v64 = vld [vmem:[%s1 + $0xc0] sm:$0xff]
    %v65 = vld [vmem:[%s1 + $0xc8] sm:$0xff]
    %v66 = vld [vmem:[%s1 + $0xd0] sm:$0xff]
    %v67 = vld [vmem:[%s1 + $0xd8] sm:$0xff]
    %v68 = vld [vmem:[%s1 + $0xe0] sm:$0xff]
    %v69 = vld [vmem:[%s1 + $0xe8] sm:$0xff]
    %v70 = vld [vmem:[%s1 + $0xf0] sm:$0xff]
    %v71 = vld [vmem:[%s1 + $0xf8] sm:$0xff]
    %v72 = vld [vmem:[%s1 + $0x100] sm:$0xff]
    %v73 = vld [vmem:[%s1 + $0x108] sm:$0xff]
    %v74 = vld [vmem:[%s1 + $0x110] sm:$0xff]
    %v75 = vld [vmem:[%s1 + $0x118] sm:$0xff]
    %v76 = vld [vmem:[%s1 + $0x120] sm:$0xff]
    %v77 = vld [vmem:[%s1 + $0x128] sm:$0xff]
    %v78 = vld [vmem:[%s1 + $0x130] sm:$0xff]
    %v79 = vld [vmem:[%s1 + $0x138] sm:$0xff]
    %v80 = vld [vmem:[%s1 + $0x140] sm:$0xff]
    %v81 = vld [vmem:[%s1 + $0x148] sm:$0xff]
    %v82 = vld [vmem:[%s1 + $0x150] sm:$0xff]
    %v83 = vld [vmem:[%s1 + $0x158] sm:$0xff]
    %v84 = vld [vmem:[%s1 + $0x160] sm:$0xff]
    %v85 = vld [vmem:[%s1 + $0x168] sm:$0xff]
    %v86 = vld [vmem:[%s1 + $0x170] sm:$0xff]
    %v87 = vld [vmem:[%s1 + $0x178] sm:$0xff]
    %v88 = vld [vmem:[%s1 + $0x180] sm:$0xff]
    %v89 = vld [vmem:[%s1 + $0x188] sm:$0xff]
    %v90 = vld [vmem:[%s1 + $0x190] sm:$0xff]
    %v91 = vld [vmem:[%s1 + $0x198] sm:$0xff]
    %v92 = vld [vmem:[%s1 + $0x1a0] sm:$0xff]
    %v93 = vld [vmem:[%s1 + $0x1a8] sm:$0xff]
    %v94 = vld [vmem:[%s1 + $0x1b0] sm:$0xff]
    %v95 = vld [vmem:[%s1 + $0x1b8] sm:$0xff]
    %v96 = vld [vmem:[%s1 + $0x1c0] sm:$0xff]
    %v97 = vld [vmem:[%s1 + $0x1c8] sm:$0xff]
    %v98 = vld [vmem:[%s1 + $0x1d0] sm:$0xff]
    %v99 = vld [vmem:[%s1 + $0x1d8] sm:$0xff]
    %v100 = vld [vmem:[%s1 + $0x1e0] sm:$0xff]
    %v101 = vld [vmem:[%s1 + $0x1e8] sm:$0xff]
    %v102 = vld [vmem:[%s1 + $0x1f0] sm:$0xff]
    %v103 = vld [vmem:[%s1 + $0x1f8] sm:$0xff]
    %v104 = vld [vmem:[%s1 + $0x200] sm:$0xff]
    %v105 = vld [vmem:[%s1 + $0x208] sm:$0xff]
    %v106 = vld [vmem:[%s1 + $0x210] sm:$0xff]
    %v107 = vld [vmem:[%s1 + $0x218] sm:$0xff]
    %v108 = vld [vmem:[%s1 + $0x220] sm:$0xff]
    %v109 = vld [vmem:[%s1 + $0x228] sm:$0xff]
    %v110 = vld [vmem:[%s1 + $0x230] sm:$0xff]
    %v111 = vld [vmem:[%s1 + $0x238] sm:$0xff]
    %v112 = vld [vmem:[%s1 + $0x240] sm:$0xff]
    %v113 = vld [vmem:[%s1 + $0x248] sm:$0xff]
    %v114 = vld [vmem:[%s1 + $0x250] sm:$0xff]
    %v115 = vld [vmem:[%s1 + $0x258] sm:$0xff]
    %v116 = vld [vmem:[%s1 + $0x260] sm:$0xff]
    %v117 = vld [vmem:[%s1 + $0x268] sm:$0xff]
    %v118 = vld [vmem:[%s1 + $0x270] sm:$0xff]
    %v119 = vld [vmem:[%s1 + $0x278] sm:$0xff]
    %v120 = vld [vmem:[%s1 + $0x280] sm:$0xff]
    %v121 = vld [vmem:[%s1 + $0x288] sm:$0xff]
    %v122 = vld [vmem:[%s1 + $0x290] sm:$0xff]
    %v123 = vld [vmem:[%s1 + $0x298] sm:$0xff]
    %v124 = vld [vmem:[%s1 + $0x2a0] sm:$0xff]
    %v125 = vld [vmem:[%s1 + $0x2a8] sm:$0xff]
    %v126 = vld [vmem:[%s1 + $0x2b0] sm:$0xff]
    %v127 = vld [vmem:[%s1 + $0x2b8] sm:$0xff]
    %v128 = vld [vmem:[%s1 + $0x2c0] sm:$0xff]
    %v129 = vld [vmem:[%s1 + $0x2c8] sm:$0xff]
    %v130 = vld [vmem:[%s1 + $0x2d0] sm:$0xff]
    %v131 = vld [vmem:[%s1 + $0x2d8] sm:$0xff]
    %v132 = vld [vmem:[%s1 + $0x2e0] sm:$0xff]
    %v133 = vld [vmem:[%s1 + $0x2e8] sm:$0xff]
    %v134 = vld [vmem:[%s1 + $0x2f0] sm:$0xff]
    %v135 = vld [vmem:[%s1 + $0x2f8] sm:$0xff]
    %v136 = vld [vmem:[%s1 + $0x300] sm:$0xff]
    %v137 = vld [vmem:[%s1 + $0x308] sm:$0xff]
    %v138 = vld [vmem:[%s1 + $0x310] sm:$0xff]
    %v139 = vld [vmem:[%s1 + $0x318] sm:$0xff]
    %v140 = vld [vmem:[%s1 + $0x320] sm:$0xff]
    %v141 = vld [vmem:[%s1 + $0x328] sm:$0xff]
    %v142 = vld [vmem:[%s1 + $0x330] sm:$0xff]
    %v143 = vld [vmem:[%s1 + $0x338] sm:$0xff]
    %v144 = vld [vmem:[%s1 + $0x340] sm:$0xff]
    %v145 = vld [vmem:[%s1 + $0x348] sm:$0xff]
    %v146 = vld [vmem:[%s1 + $0x350] sm:$0xff]
    %v147 = vld [vmem:[%s1 + $0x358] sm:$0xff]
    %v148 = vld [vmem:[%s1 + $0x360] sm:$0xff]
    %v149 = vld [vmem:[%s1 + $0x368] sm:$0xff]
    %v150 = vld [vmem:[%s1 + $0x370] sm:$0xff]
    %v151 = vld [vmem:[%s1 + $0x378] sm:$0xff]
    %v152 = vld [vmem:[%s1 + $0x380] sm:$0xff]
    %v153 = vld [vmem:[%s1 + $0x388] sm:$0xff]
    %v154 = vld [vmem:[%s1 + $0x390] sm:$0xff]
    %v155 = vld [vmem:[%s1 + $0x398] sm:$0xff]
    %v156 = vld [vmem:[%s1 + $0x3a0] sm:$0xff]
    %v157 = vld [vmem:[%s1 + $0x3a8] sm:$0xff]
    %v158 = vld [vmem:[%s1 + $0x3b0] sm:$0xff]
    %v159 = vld [vmem:[%s1 + $0x3b8] sm:$0xff]
    %v160 = vld [vmem:[%s1 + $0x3c0] sm:$0xff]
    %v161 = vld [vmem:[%s1 + $0x3c8] sm:$0xff]
    %v162 = vld [vmem:[%s1 + $0x3d0] sm:$0xff]
    %v163 = vld [vmem:[%s1 + $0x3d8] sm:$0xff]
    %v164 = vld [vmem:[%s1 + $0x3e0] sm:$0xff]
    %v165 = vld [vmem:[%s1 + $0x3e8] sm:$0xff]
    %v166 = vld [vmem:[%s1 + $0x3f0] sm:$0xff]
    %v167 = vld [vmem:[%s1 + $0x3f8] sm:$0xff]
    %v168 = vld [vmem:[%s1 + $0x400] sm:$0xff]
    %v169 = vld [vmem:[%s1 + $0x408] sm:$0xff]
    %v170 = vld [vmem:[%s1 + $0x410] sm:$0xff]
    %v171 = vld [vmem:[%s1 + $0x418] sm:$0xff]
    %v172 = vld [vmem:[%s1 + $0x420] sm:$0xff]
    %v173 = vld [vmem:[%s1 + $0x428] sm:$0xff]
    %v174 = vld [vmem:[%s1 + $0x430] sm:$0xff]
    %v175 = vld [vmem:[%s1 + $0x438] sm:$0xff]
    %v176 = vld [vmem:[%s1 + $0x440] sm:$0xff]
    %v177 = vld [vmem:[%s1 + $0x448] sm:$0xff]
    %v178 = vld [vmem:[%s1 + $0x450] sm:$0xff]
    %v179 = vld [vmem:[%s1 + $0x458] sm:$0xff]
    %v180 = vld [vmem:[%s1 + $0x460] sm:$0xff]
    %v181 = vld [vmem:[%s1 + $0x468] sm:$0xff]
    %v182 = vld [vmem:[%s1 + $0x470] sm:$0xff]
    %v183 = vld [vmem:[%s1 + $0x478] sm:$0xff]
    %v184 = vld [vmem:[%s1 + $0x480] sm:$0xff]
    %v185 = vld [vmem:[%s1 + $0x488] sm:$0xff]
    %v186 = vld [vmem:[%s1 + $0x490] sm:$0xff]
    %v187 = vld [vmem:[%s1 + $0x498] sm:$0xff]
    %v188 = vld [vmem:[%s1 + $0x4a0] sm:$0xff]
    %v189 = vld [vmem:[%s1 + $0x4a8] sm:$0xff]
    %v190 = vld [vmem:[%s1 + $0x4b0] sm:$0xff]
    %v191 = vld [vmem:[%s1 + $0x4b8] sm:$0xff]
    %v192 = vld [vmem:[%s1 + $0x4c0] sm:$0xff]
    %v193 = vld [vmem:[%s1 + $0x4c8] sm:$0xff]
    %v194 = vld [vmem:[%s1 + $0x4d0] sm:$0xff]
    %v195 = vld [vmem:[%s1 + $0x4d8] sm:$0xff]
    %v196 = vld [vmem:[%s1 + $0x4e0] sm:$0xff]
    %v197 = vld [vmem:[%s1 + $0x4e8] sm:$0xff]
    %v198 = vld [vmem:[%s1 + $0x4f0] sm:$0xff]
    %v199 = vld [vmem:[%s1 + $0x4f8] sm:$0xff]
    %v200 = vld [vmem:[%s1 + $0x500] sm:$0xff]
    %v201 = vld [vmem:[%s1 + $0x508] sm:$0xff]
    %v202 = vld [vmem:[%s1 + $0x510] sm:$0xff]
    %v203 = vld [vmem:[%s1 + $0x518] sm:$0xff]
    %v204 = vld [vmem:[%s1 + $0x520] sm:$0xff]
    %v205 = vld [vmem:[%s1 + $0x528] sm:$0xff]
    %v206 = vld [vmem:[%s1 + $0x530] sm:$0xff]
    %v207 = vld [vmem:[%s1 + $0x538] sm:$0xff]
    %v208 = vld [vmem:[%s1 + $0x540] sm:$0xff]
    %v209 = vld [vmem:[%s1 + $0x548] sm:$0xff]
    %v210 = vld [vmem:[%s1 + $0x550] sm:$0xff]
    %v211 = vld [vmem:[%s1 + $0x558] sm:$0xff]
    %v212 = vld [vmem:[%s1 + $0x560] sm:$0xff]
    %v213 = vld [vmem:[%s1 + $0x568] sm:$0xff]
    %v214 = vld [vmem:[%s1 + $0x570] sm:$0xff]
    %v215 = vld [vmem:[%s1 + $0x578] sm:$0xff]
    %v216 = vld [vmem:[%s1 + $0x580] sm:$0xff]
    %v217 = vld [vmem:[%s1 + $0x588] sm:$0xff]
    %v218 = vld [vmem:[%s1 + $0x590] sm:$0xff]
    %v219 = vld [vmem:[%s1 + $0x598] sm:$0xff]
    %v220 = vld [vmem:[%s1 + $0x5a0] sm:$0xff]
    %v221 = vld [vmem:[%s1 + $0x5a8] sm:$0xff]
    %v222 = vld [vmem:[%s1 + $0x5b0] sm:$0xff]
    %v223 = vld [vmem:[%s1 + $0x5b8] sm:$0xff]
    %v224 = vld [vmem:[%s1 + $0x5c0] sm:$0xff]
    %v225 = vld [vmem:[%s1 + $0x5c8] sm:$0xff]
    %v226 = vld [vmem:[%s1 + $0x5d0] sm:$0xff]
    %v227 = vld [vmem:[%s1 + $0x5d8] sm:$0xff]
    %v228 = vld [vmem:[%s1 + $0x5e0] sm:$0xff]
    %v229 = vld [vmem:[%s1 + $0x5e8] sm:$0xff]
    %v230 = vld [vmem:[%s1 + $0x5f0] sm:$0xff]
    %v231 = vld [vmem:[%s1 + $0x5f8] sm:$0xff]
    %v232 = vld [vmem:[%s1 + $0x600] sm:$0xff]
    %v233 = vld [vmem:[%s1 + $0x608] sm:$0xff]
    %v234 = vld [vmem:[%s1 + $0x610] sm:$0xff]
    %v235 = vld [vmem:[%s1 + $0x618] sm:$0xff]
    %v236 = vld [vmem:[%s1 + $0x620] sm:$0xff]
    %v237 = vld [vmem:[%s1 + $0x628] sm:$0xff]
    %v238 = vld [vmem:[%s1 + $0x630] sm:$0xff]
    %v239 = vld [vmem:[%s1 + $0x638] sm:$0xff]
    %v240 = vld [vmem:[%s1 + $0x640] sm:$0xff]
    %v241 = vld [vmem:[%s1 + $0x648] sm:$0xff]
    %v242 = vld [vmem:[%s1 + $0x650] sm:$0xff]
    %v243 = vld [vmem:[%s1 + $0x658] sm:$0xff]
    %v244 = vld [vmem:[%s1 + $0x660] sm:$0xff]
    %v245 = vld [vmem:[%s1 + $0x668] sm:$0xff]
    %v246 = vld [vmem:[%s1 + $0x670] sm:$0xff]
    %v247 = vld [vmem:[%s1 + $0x678] sm:$0xff]
    %v248 = vld [vmem:[%s1 + $0x680] sm:$0xff]
    %v249 = vld [vmem:[%s1 + $0x688] sm:$0xff]
    %v250 = vld [vmem:[%s1 + $0x690] sm:$0xff]
    %v251 = vld [vmem:[%s1 + $0x698] sm:$0xff]
    %v252 = vld [vmem:[%s1 + $0x6a0] sm:$0xff]
    %v253 = vld [vmem:[%s1 + $0x6a8] sm:$0xff]
    %v254 = vld [vmem:[%s1 + $0x6b0] sm:$0xff]
    %v255 = vld [vmem:[%s1 + $0x6b8] sm:$0xff]
    %v256 = vld [vmem:[%s1 + $0x6c0] sm:$0xff]
    %v257 = vld [vmem:[%s1 + $0x6c8] sm:$0xff]
    %v258 = vld [vmem:[%s1 + $0x6d0] sm:$0xff]
    %v259 = vld [vmem:[%s1 + $0x6d8] sm:$0xff]
    %v260 = vld [vmem:[%s1 + $0x6e0] sm:$0xff]
    %v261 = vld [vmem:[%s1 + $0x6e8] sm:$0xff]
    %v262 = vld [vmem:[%s1 + $0x6f0] sm:$0xff]
    %v263 = vld [vmem:[%s1 + $0x6f8] sm:$0xff]
    %v264 = vld [vmem:[%s1 + $0x700] sm:$0xff]
    %v265 = vld [vmem:[%s1 + $0x708] sm:$0xff]
    %v266 = vld [vmem:[%s1 + $0x710] sm:$0xff]
    %v267 = vld [vmem:[%s1 + $0x718] sm:$0xff]
    %v268 = vld [vmem:[%s1 + $0x720] sm:$0xff]
    %v269 = vld [vmem:[%s1 + $0x728] sm:$0xff]
    %v270 = vld [vmem:[%s1 + $0x730] sm:$0xff]
    %v271 = vld [vmem:[%s1 + $0x738] sm:$0xff]
    %v272 = vld [vmem:[%s1 + $0x740] sm:$0xff]
    %v273 = vld [vmem:[%s1 + $0x748] sm:$0xff]
    %v274 = vld [vmem:[%s1 + $0x750] sm:$0xff]
    %v275 = vld [vmem:[%s1 + $0x758] sm:$0xff]
    %v276 = vld [vmem:[%s1 + $0x760] sm:$0xff]
    %v277 = vld [vmem:[%s1 + $0x768] sm:$0xff]
    %v278 = vld [vmem:[%s1 + $0x770] sm:$0xff]
    %v279 = vld [vmem:[%s1 + $0x778] sm:$0xff]
    %v280 = vld [vmem:[%s1 + $0x780] sm:$0xff]
    %v281 = vld [vmem:[%s1 + $0x788] sm:$0xff]
    %v282 = vld [vmem:[%s1 + $0x790] sm:$0xff]
    %v283 = vld [vmem:[%s1 + $0x798] sm:$0xff]
    %v284 = vld [vmem:[%s1 + $0x7a0] sm:$0xff]
    %v285 = vld [vmem:[%s1 + $0x7a8] sm:$0xff]
    %v286 = vld [vmem:[%s1 + $0x7b0] sm:$0xff]
    %v287 = vld [vmem:[%s1 + $0x7b8] sm:$0xff]
    %v288 = vld [vmem:[%s1 + $0x7c0] sm:$0xff]
    %v289 = vld [vmem:[%s1 + $0x7c8] sm:$0xff]
    %v290 = vld [vmem:[%s1 + $0x7d0] sm:$0xff]
    %v291 = vld [vmem:[%s1 + $0x7d8] sm:$0xff]
    %v292 = vld [vmem:[%s1 + $0x7e0] sm:$0xff]
    %v293 = vld [vmem:[%s1 + $0x7e8] sm:$0xff]
    %v294 = vld [vmem:[%s1 + $0x7f0] sm:$0xff]
    %v295 = vld [vmem:[%s1 + $0x7f8] sm:$0xff]
    %v296 = vld [vmem:[%s1 + $0x800] sm:$0xff]
    %v297 = vld [vmem:[%s1 + $0x808] sm:$0xff]
    %v298 = vld [vmem:[%s1 + $0x810] sm:$0xff]
    %v299 = vld [vmem:[%s1 + $0x818] sm:$0xff]
    %v300 = vld [vmem:[%s1 + $0x820] sm:$0xff]
    %v301 = vld [vmem:[%s1 + $0x828] sm:$0xff]
    %v302 = vld [vmem:[%s1 + $0x830] sm:$0xff]
    %v303 = vld [vmem:[%s1 + $0x838] sm:$0xff]
    %v304 = vld [vmem:[%s1 + $0x840] sm:$0xff]
    %v305 = vld [vmem:[%s1 + $0x848] sm:$0xff]
    %v306 = vld [vmem:[%s1 + $0x850] sm:$0xff]
    %v307 = vld [vmem:[%s1 + $0x858] sm:$0xff]
    %v308 = vld [vmem:[%s1 + $0x860] sm:$0xff]
    %v309 = vld [vmem:[%s1 + $0x868] sm:$0xff]
    %v310 = vld [vmem:[%s1 + $0x870] sm:$0xff]
    %v311 = vld [vmem:[%s1 + $0x878] sm:$0xff]
    %v312 = vld [vmem:[%s1 + $0x880] sm:$0xff]
    %v313 = vld [vmem:[%s1 + $0x888] sm:$0xff]
    %v314 = vld [vmem:[%s1 + $0x890] sm:$0xff]
    %v315 = vld [vmem:[%s1 + $0x898] sm:$0xff]
    %v316 = vld [vmem:[%s1 + $0x8a0] sm:$0xff]
    %v317 = vld [vmem:[%s1 + $0x8a8] sm:$0xff]
    %v318 = vld [vmem:[%s1 + $0x8b0] sm:$0xff]
    %v319 = vld [vmem:[%s1 + $0x8b8] sm:$0xff]
    %v320 = vld [vmem:[%s1 + $0x8c0] sm:$0xff]
    %v321 = vld [vmem:[%s1 + $0x8c8] sm:$0xff]
    %v322 = vld [vmem:[%s1 + $0x8d0] sm:$0xff]
    %v323 = vld [vmem:[%s1 + $0x8d8] sm:$0xff]
    %v324 = vld [vmem:[%s1 + $0x8e0] sm:$0xff]
    %v325 = vld [vmem:[%s1 + $0x8e8] sm:$0xff]
    %v326 = vld [vmem:[%s1 + $0x8f0] sm:$0xff]
    %v327 = vld [vmem:[%s1 + $0x8f8] sm:$0xff]
    %v328 = vld [vmem:[%s1 + $0x900] sm:$0xff]
    %v329 = vld [vmem:[%s1 + $0x908] sm:$0xff]
    %v330 = vld [vmem:[%s1 + $0x910] sm:$0xff]
    %v331 = vld [vmem:[%s1 + $0x918] sm:$0xff]
    %v332 = vld [vmem:[%s1 + $0x920] sm:$0xff]
    %v333 = vld [vmem:[%s1 + $0x928] sm:$0xff]
    %v334 = vld [vmem:[%s1 + $0x930] sm:$0xff]
    %v335 = vld [vmem:[%s1 + $0x938] sm:$0xff]
    %v336 = vld [vmem:[%s1 + $0x940] sm:$0xff]
    %v337 = vld [vmem:[%s1 + $0x948] sm:$0xff]
    %v338 = vld [vmem:[%s1 + $0x950] sm:$0xff]
    %v339 = vld [vmem:[%s1 + $0x958] sm:$0xff]
    %v340 = vld [vmem:[%s1 + $0x960] sm:$0xff]
    %v341 = vld [vmem:[%s1 + $0x968] sm:$0xff]
    %v342 = vld [vmem:[%s1 + $0x970] sm:$0xff]
    %v343 = vld [vmem:[%s1 + $0x978] sm:$0xff]
    %v344 = vld [vmem:[%s1 + $0x980] sm:$0xff]
    %v345 = vld [vmem:[%s1 + $0x988] sm:$0xff]
    %v346 = vld [vmem:[%s1 + $0x990] sm:$0xff]
    %v347 = vld [vmem:[%s1 + $0x998] sm:$0xff]
    %v348 = vld [vmem:[%s1 + $0x9a0] sm:$0xff]
    %v349 = vld [vmem:[%s1 + $0x9a8] sm:$0xff]
    %v350 = vld [vmem:[%s1 + $0x9b0] sm:$0xff]
    %v351 = vld [vmem:[%s1 + $0x9b8] sm:$0xff]
    %v352 = vld [vmem:[%s1 + $0x9c0] sm:$0xff]
    %v353 = vld [vmem:[%s1 + $0x9c8] sm:$0xff]
    %v354 = vld [vmem:[%s1 + $0x9d0] sm:$0xff]
    %v355 = vld [vmem:[%s1 + $0x9d8] sm:$0xff]
    %v356 = vld [vmem:[%s1 + $0x9e0] sm:$0xff]
    %v357 = vld [vmem:[%s1 + $0x9e8] sm:$0xff]
    %v358 = vld [vmem:[%s1 + $0x9f0] sm:$0xff]
    %v359 = vld [vmem:[%s1 + $0x9f8] sm:$0xff]
    %v360 = vld [vmem:[%s1 + $0xa00] sm:$0xff]
    %v361 = vld [vmem:[%s1 + $0xa08] sm:$0xff]
    %v362 = vld [vmem:[%s1 + $0xa10] sm:$0xff]
    %v363 = vld [vmem:[%s1 + $0xa18] sm:$0xff]
    %v364 = vld [vmem:[%s1 + $0xa20] sm:$0xff]
    %v365 = vld [vmem:[%s1 + $0xa28] sm:$0xff]
    %v366 = vld [vmem:[%s1 + $0xa30] sm:$0xff]
    %v367 = vld [vmem:[%s1 + $0xa38] sm:$0xff]
    %v368 = vld [vmem:[%s1 + $0xa40] sm:$0xff]
    %v369 = vld [vmem:[%s1 + $0xa48] sm:$0xff]
    %v370 = vld [vmem:[%s1 + $0xa50] sm:$0xff]
    %v371 = vld [vmem:[%s1 + $0xa58] sm:$0xff]
    %v372 = vld [vmem:[%s1 + $0xa60] sm:$0xff]
    %v373 = vld [vmem:[%s1 + $0xa68] sm:$0xff]
    %v374 = vld [vmem:[%s1 + $0xa70] sm:$0xff]
    %v375 = vld [vmem:[%s1 + $0xa78] sm:$0xff]
    %v376 = vld [vmem:[%s1 + $0xa80] sm:$0xff]
    %v377 = vld [vmem:[%s1 + $0xa88] sm:$0xff]
    %v378 = vld [vmem:[%s1 + $0xa90] sm:$0xff]
    %v379 = vld [vmem:[%s1 + $0xa98] sm:$0xff]
    %v380 = vld [vmem:[%s1 + $0xaa0] sm:$0xff]
    %v381 = vld [vmem:[%s1 + $0xaa8] sm:$0xff]
    %v382 = vld [vmem:[%s1 + $0xab0] sm:$0xff]
    %v383 = vld [vmem:[%s1 + $0xab8] sm:$0xff]
    %v384 = vld [vmem:[%s1 + $0xac0] sm:$0xff]
    %v385 = vld [vmem:[%s1 + $0xac8] sm:$0xff]
    %v386 = vld [vmem:[%s1 + $0xad0] sm:$0xff]
    %v387 = vld [vmem:[%s1 + $0xad8] sm:$0xff]
    %v388 = vld [vmem:[%s1 + $0xae0] sm:$0xff]
    %v389 = vld [vmem:[%s1 + $0xae8] sm:$0xff]
    %v390 = vld [vmem:[%s1 + $0xaf0] sm:$0xff]
    %v391 = vld [vmem:[%s1 + $0xaf8] sm:$0xff]
    %v392 = vld [vmem:[%s1 + $0xb00] sm:$0xff]
    %v393 = vld [vmem:[%s1 + $0xb08] sm:$0xff]
    %v394 = vld [vmem:[%s1 + $0xb10] sm:$0xff]
    %v395 = vld [vmem:[%s1 + $0xb18] sm:$0xff]
    %v396 = vld [vmem:[%s1 + $0xb20] sm:$0xff]
    %v397 = vld [vmem:[%s1 + $0xb28] sm:$0xff]
    %v398 = vld [vmem:[%s1 + $0xb30] sm:$0xff]
    %v399 = vld [vmem:[%s1 + $0xb38] sm:$0xff]
    %v400 = vld [vmem:[%s1 + $0xb40] sm:$0xff]
    %v401 = vld [vmem:[%s1 + $0xb48] sm:$0xff]
    %v402 = vld [vmem:[%s1 + $0xb50] sm:$0xff]
    %v403 = vld [vmem:[%s1 + $0xb58] sm:$0xff]
    %v404 = vld [vmem:[%s1 + $0xb60] sm:$0xff]
    %v405 = vld [vmem:[%s1 + $0xb68] sm:$0xff]
    %v406 = vld [vmem:[%s1 + $0xb70] sm:$0xff]
    %v407 = vld [vmem:[%s1 + $0xb78] sm:$0xff]
    %v408 = vld [vmem:[%s1 + $0xb80] sm:$0xff]
    %v409 = vld [vmem:[%s1 + $0xb88] sm:$0xff]
    %v410 = vld [vmem:[%s1 + $0xb90] sm:$0xff]
    %v411 = vld [vmem:[%s1 + $0xb98] sm:$0xff]
    %v412 = vld [vmem:[%s1 + $0xba0] sm:$0xff]
    %v413 = vld [vmem:[%s1 + $0xba8] sm:$0xff]
    %v414 = vld [vmem:[%s1 + $0xbb0] sm:$0xff]
    %v415 = vld [vmem:[%s1 + $0xbb8] sm:$0xff]
    %v416 = vld [vmem:[%s1 + $0xbc0] sm:$0xff]
    %v417 = vld [vmem:[%s1 + $0xbc8] sm:$0xff]
    %v418 = vld [vmem:[%s1 + $0xbd0] sm:$0xff]
    %v419 = vld [vmem:[%s1 + $0xbd8] sm:$0xff]
    %v420 = vld [vmem:[%s1 + $0xbe0] sm:$0xff]
    %v421 = vld [vmem:[%s1 + $0xbe8] sm:$0xff]
    %v422 = vld [vmem:[%s1 + $0xbf0] sm:$0xff]
    %v423 = vld [vmem:[%s1 + $0xbf8] sm:$0xff]
    %v424 = vld [vmem:[%s1 + $0xc00] sm:$0xff]
    %v425 = vld [vmem:[%s1 + $0xc08] sm:$0xff]
    %v426 = vld [vmem:[%s1 + $0xc10] sm:$0xff]
    %v427 = vld [vmem:[%s1 + $0xc18] sm:$0xff]
    %v428 = vld [vmem:[%s1 + $0xc20] sm:$0xff]
    %v429 = vld [vmem:[%s1 + $0xc28] sm:$0xff]
    %v430 = vld [vmem:[%s1 + $0xc30] sm:$0xff]
    %v431 = vld [vmem:[%s1 + $0xc38] sm:$0xff]
    %v432 = vld [vmem:[%s1 + $0xc40] sm:$0xff]
    %v433 = vld [vmem:[%s1 + $0xc48] sm:$0xff]
    %v434 = vld [vmem:[%s1 + $0xc50] sm:$0xff]
    %v435 = vld [vmem:[%s1 + $0xc58] sm:$0xff]
    %v436 = vld [vmem:[%s1 + $0xc60] sm:$0xff]
    %v437 = vld [vmem:[%s1 + $0xc68] sm:$0xff]
    %v438 = vld [vmem:[%s1 + $0xc70] sm:$0xff]
    %v439 = vld [vmem:[%s1 + $0xc78] sm:$0xff]
    %v440 = vld [vmem:[%s1 + $0xc80] sm:$0xff]
    %v441 = vld [vmem:[%s1 + $0xc88] sm:$0xff]
    %v442 = vld [vmem:[%s1 + $0xc90] sm:$0xff]
    %v443 = vld [vmem:[%s1 + $0xc98] sm:$0xff]
    %v444 = vld [vmem:[%s1 + $0xca0] sm:$0xff]
    %v445 = vld [vmem:[%s1 + $0xca8] sm:$0xff]
    %v446 = vld [vmem:[%s1 + $0xcb0] sm:$0xff]
    %v447 = vld [vmem:[%s1 + $0xcb8] sm:$0xff]
    %v448 = vld [vmem:[%s1 + $0xcc0] sm:$0xff]
    %v449 = vld [vmem:[%s1 + $0xcc8] sm:$0xff]
    %v450 = vld [vmem:[%s1 + $0xcd0] sm:$0xff]
    %v451 = vld [vmem:[%s1 + $0xcd8] sm:$0xff]
    %v452 = vld [vmem:[%s1 + $0xce0] sm:$0xff]
    %v453 = vld [vmem:[%s1 + $0xce8] sm:$0xff]
    %v454 = vld [vmem:[%s1 + $0xcf0] sm:$0xff]
    %v455 = vld [vmem:[%s1 + $0xcf8] sm:$0xff]
    %v456 = vld [vmem:[%s1 + $0xd00] sm:$0xff]
    %v457 = vld [vmem:[%s1 + $0xd08] sm:$0xff]
    %v458 = vld [vmem:[%s1 + $0xd10] sm:$0xff]
    %v459 = vld [vmem:[%s1 + $0xd18] sm:$0xff]
    %v460 = vld [vmem:[%s1 + $0xd20] sm:$0xff]
    %v461 = vld [vmem:[%s1 + $0xd28] sm:$0xff]
    %v462 = vld [vmem:[%s1 + $0xd30] sm:$0xff]
    %v463 = vld [vmem:[%s1 + $0xd38] sm:$0xff]
    %v464 = vld [vmem:[%s1 + $0xd40] sm:$0xff]
    %v465 = vld [vmem:[%s1 + $0xd48] sm:$0xff]
    %v466 = vld [vmem:[%s1 + $0xd50] sm:$0xff]
    %v467 = vld [vmem:[%s1 + $0xd58] sm:$0xff]
    %v468 = vld [vmem:[%s1 + $0xd60] sm:$0xff]
    %v469 = vld [vmem:[%s1 + $0xd68] sm:$0xff]
    %v470 = vld [vmem:[%s1 + $0xd70] sm:$0xff]
    %v471 = vld [vmem:[%s1 + $0xd78] sm:$0xff]
    %v472 = vld [vmem:[%s1 + $0xd80] sm:$0xff]
    %v473 = vld [vmem:[%s1 + $0xd88] sm:$0xff]
    %v474 = vld [vmem:[%s1 + $0xd90] sm:$0xff]
    %v475 = vld [vmem:[%s1 + $0xd98] sm:$0xff]
    %v476 = vld [vmem:[%s1 + $0xda0] sm:$0xff]
    %v477 = vld [vmem:[%s1 + $0xda8] sm:$0xff]
    %v478 = vld [vmem:[%s1 + $0xdb0] sm:$0xff]
    %v479 = vld [vmem:[%s1 + $0xdb8] sm:$0xff]
    %v480 = vld [vmem:[%s1 + $0xdc0] sm:$0xff]
    %v481 = vld [vmem:[%s1 + $0xdc8] sm:$0xff]
    %v482 = vld [vmem:[%s1 + $0xdd0] sm:$0xff]
    %v483 = vld [vmem:[%s1 + $0xdd8] sm:$0xff]
    %v484 = vld [vmem:[%s1 + $0xde0] sm:$0xff]
    %v485 = vld [vmem:[%s1 + $0xde8] sm:$0xff]
    %v486 = vld [vmem:[%s1 + $0xdf0] sm:$0xff]
    %v487 = vld [vmem:[%s1 + $0xdf8] sm:$0xff]
    %v488 = vld [vmem:[%s2] sm:$0xf]
    %v490 = vlaneseq
    %v491 = vshrl.u32 %v490, 7
    %v492 = vsub.s32 0, %v491
    %v493 = vrot.slane %v488, %v492
    %v494 = vlaneseq
    %v495 = vshrl.u32 %v494, 7
    %v496 = vsub.s32 1, %v495
    %v497 = vrot.slane %v488, %v496
    %v498 = vlaneseq
    %v499 = vshrl.u32 %v498, 7
    %v500 = vsub.s32 2, %v499
    %v501 = vrot.slane %v488, %v500
    %v502 = vlaneseq
    %v503 = vshrl.u32 %v502, 7
    %v504 = vsub.s32 3, %v503
    %v505 = vrot.slane %v488, %v504
    %510 = vmatprep.subr.mxu0 %v41
    %511 = vmatpush1.msra.mxu0 %v40
    %512 = vmatprep.subr.mxu0 %v45
    %513 = vmatpush1.msra.mxu0 %v44
    %514 = vmatprep.subr.mxu0 %v49
    %515 = vmatpush1.msra.mxu0 %v48
    %516 = vmatprep.subr.mxu0 %v53
    %517 = vmatpush1.msra.mxu0 %v52
    %518 = vmatprep.subr.mxu0 %v57
    %519 = vmatpush1.msra.mxu0 %v56
    %520 = vmatprep.subr.mxu0 %v61
    %521 = vmatpush1.msra.mxu0 %v60
    %522 = vmatprep.subr.mxu0 %v65
    %523 = vmatpush1.msra.mxu0 %v64
    %524 = vmatprep.subr.mxu0 %v69
    %525 = vmatpush1.msra.mxu0 %v68
    %526 = vmatprep.subr.mxu0 %v73
    %527 = vmatpush1.msra.mxu0 %v72
    %528 = vmatprep.subr.mxu0 %v77
    %529 = vmatpush1.msra.mxu0 %v76
    %530 = vmatprep.subr.mxu0 %v81
    %531 = vmatpush1.msra.mxu0 %v80
    %532 = vmatprep.subr.mxu0 %v85
    %533 = vmatpush1.msra.mxu0 %v84
    %534 = vmatprep.subr.mxu0 %v89
    %535 = vmatpush1.msra.mxu0 %v88
    %536 = vmatprep.subr.mxu0 %v93
    %537 = vmatpush1.msra.mxu0 %v92
    %538 = vmatprep.subr.mxu0 %v97
    %539 = vmatpush1.msra.mxu0 %v96
    %540 = vmatprep.subr.mxu0 %v101
    %541 = vmatpush1.msra.mxu0 %v100
    %542 = vmatprep.subr.mxu0 %v105
    %543 = vmatpush1.msra.mxu0 %v104
    %544 = vmatprep.subr.mxu0 %v109
    %545 = vmatpush1.msra.mxu0 %v108
    %546 = vmatprep.subr.mxu0 %v113
    %547 = vmatpush1.msra.mxu0 %v112
    %548 = vmatprep.subr.mxu0 %v117
    %549 = vmatpush1.msra.mxu0 %v116
    %550 = vmatprep.subr.mxu0 %v121
    %551 = vmatpush1.msra.mxu0 %v120
    %552 = vmatprep.subr.mxu0 %v125
    %553 = vmatpush1.msra.mxu0 %v124
    %554 = vmatprep.subr.mxu0 %v129
    %555 = vmatpush1.msra.mxu0 %v128
    %556 = vmatprep.subr.mxu0 %v133
    %557 = vmatpush1.msra.mxu0 %v132
    %558 = vmatprep.subr.mxu0 %v137
    %559 = vmatpush1.msra.mxu0 %v136
    %560 = vmatprep.subr.mxu0 %v141
    %561 = vmatpush1.msra.mxu0 %v140
    %562 = vmatprep.subr.mxu0 %v145
    %563 = vmatpush1.msra.mxu0 %v144
    %564 = vmatprep.subr.mxu0 %v149
    %565 = vmatpush1.msra.mxu0 %v148
    %566 = vmatprep.subr.mxu0 %v153
    %567 = vmatpush1.msra.mxu0 %v152
    %568 = vmatprep.subr.mxu0 %v157
    %569 = vmatpush1.msra.mxu0 %v156
    %570 = vmatprep.subr.mxu0 %v161
    %571 = vmatpush1.msra.mxu0 %v160
    %572 = vmatprep.subr.mxu0 %v165
    %573 = vmatpush1.msra.mxu0 %v164
    %574 = vmatprep.mubr.f32.mxu0 %v34
    %575 = vmatmul.mubr.f32.gmra.mrb[0].mxu0 %v33
    %v576 = vpop.f32.mrb[0].mxu0
    %v577 = vadd.f32 %v493, %v576
    %v578 = vpop.f32.mrb[0].mxu0
    %v579 = vadd.f32 %v497, %v578
    %580 = vdwg.mxu0
    %581 = vmatprep.subr.mxu0 %v169
    %582 = vmatpush1.msra.mxu0 %v168
    %583 = vmatprep.subr.mxu0 %v173
    %584 = vmatpush1.msra.mxu0 %v172
    %585 = vmatprep.subr.mxu0 %v177
    %586 = vmatpush1.msra.mxu0 %v176
    %587 = vmatprep.subr.mxu0 %v181
    %588 = vmatpush1.msra.mxu0 %v180
    %589 = vmatprep.subr.mxu0 %v185
    %590 = vmatpush1.msra.mxu0 %v184
    %591 = vmatprep.subr.mxu0 %v189
    %592 = vmatpush1.msra.mxu0 %v188
    %593 = vmatprep.subr.mxu0 %v193
    %594 = vmatpush1.msra.mxu0 %v192
    %595 = vmatprep.subr.mxu0 %v197
    %596 = vmatpush1.msra.mxu0 %v196
    %597 = vmatprep.subr.mxu0 %v201
    %598 = vmatpush1.msra.mxu0 %v200
    %599 = vmatprep.subr.mxu0 %v205
    %600 = vmatpush1.msra.mxu0 %v204
    %601 = vmatprep.subr.mxu0 %v209
    %602 = vmatpush1.msra.mxu0 %v208
    %603 = vmatprep.subr.mxu0 %v213
    %604 = vmatpush1.msra.mxu0 %v212
    %605 = vmatprep.subr.mxu0 %v217
    %606 = vmatpush1.msra.mxu0 %v216
    %607 = vmatprep.subr.mxu0 %v221
    %608 = vmatpush1.msra.mxu0 %v220
    %609 = vmatprep.subr.mxu0 %v225
    %610 = vmatpush1.msra.mxu0 %v224
    %611 = vmatprep.subr.mxu0 %v229
    %612 = vmatpush1.msra.mxu0 %v228
    %613 = vmatprep.subr.mxu0 %v233
    %614 = vmatpush1.msra.mxu0 %v232
    %615 = vmatprep.subr.mxu0 %v237
    %616 = vmatpush1.msra.mxu0 %v236
    %617 = vmatprep.subr.mxu0 %v241
    %618 = vmatpush1.msra.mxu0 %v240
    %619 = vmatprep.subr.mxu0 %v245
    %620 = vmatpush1.msra.mxu0 %v244
    %621 = vmatprep.subr.mxu0 %v249
    %622 = vmatpush1.msra.mxu0 %v248
    %623 = vmatprep.subr.mxu0 %v253
    %624 = vmatpush1.msra.mxu0 %v252
    %625 = vmatprep.subr.mxu0 %v257
    %626 = vmatpush1.msra.mxu0 %v256
    %627 = vmatprep.subr.mxu0 %v261
    %628 = vmatpush1.msra.mxu0 %v260
    %629 = vmatprep.subr.mxu0 %v265
    %630 = vmatpush1.msra.mxu0 %v264
    %631 = vmatprep.subr.mxu0 %v269
    %632 = vmatpush1.msra.mxu0 %v268
    %633 = vmatprep.subr.mxu0 %v273
    %634 = vmatpush1.msra.mxu0 %v272
    %635 = vmatprep.subr.mxu0 %v277
    %636 = vmatpush1.msra.mxu0 %v276
    %637 = vmatprep.subr.mxu0 %v281
    %638 = vmatpush1.msra.mxu0 %v280
    %639 = vmatprep.subr.mxu0 %v285
    %640 = vmatpush1.msra.mxu0 %v284
    %641 = vmatprep.subr.mxu0 %v289
    %642 = vmatpush1.msra.mxu0 %v288
    %643 = vmatprep.subr.mxu0 %v293
    %644 = vmatpush1.msra.mxu0 %v292
    %645 = vmatprep.mubr.f32.mxu0 %v36
    %646 = vmatmul.mubr.f32.gmra.mrb[0].mxu0 %v35
    %v647 = vpop.f32.mrb[0].mxu0
    %v648 = vadd.f32 %v577, %v647
    %v649 = vpop.f32.mrb[0].mxu0
    %v650 = vadd.f32 %v579, %v649
    %651 = vdwg.mxu0
    %652 = vmatprep.subr.mxu0 %v297
    %653 = vmatpush1.msra.mxu0 %v296
    %654 = vmatprep.subr.mxu0 %v301
    %655 = vmatpush1.msra.mxu0 %v300
    %656 = vmatprep.subr.mxu0 %v305
    %657 = vmatpush1.msra.mxu0 %v304
    %658 = vmatprep.subr.mxu0 %v309
    %659 = vmatpush1.msra.mxu0 %v308
    %660 = vmatprep.subr.mxu0 %v313
    %661 = vmatpush1.msra.mxu0 %v312
    %662 = vmatprep.subr.mxu0 %v317
    %663 = vmatpush1.msra.mxu0 %v316
    %664 = vmatprep.subr.mxu0 %v321
    %665 = vmatpush1.msra.mxu0 %v320
    %666 = vmatprep.subr.mxu0 %v325
    %667 = vmatpush1.msra.mxu0 %v324
    %668 = vmatprep.subr.mxu0 %v329
    %669 = vmatpush1.msra.mxu0 %v328
    %670 = vmatprep.subr.mxu0 %v333
    %671 = vmatpush1.msra.mxu0 %v332
    %672 = vmatprep.subr.mxu0 %v337
    %673 = vmatpush1.msra.mxu0 %v336
    %674 = vmatprep.subr.mxu0 %v341
    %675 = vmatpush1.msra.mxu0 %v340
    %676 = vmatprep.subr.mxu0 %v345
    %677 = vmatpush1.msra.mxu0 %v344
    %678 = vmatprep.subr.mxu0 %v349
    %679 = vmatpush1.msra.mxu0 %v348
    %680 = vmatprep.subr.mxu0 %v353
    %681 = vmatpush1.msra.mxu0 %v352
    %682 = vmatprep.subr.mxu0 %v357
    %683 = vmatpush1.msra.mxu0 %v356
    %684 = vmatprep.subr.mxu0 %v361
    %685 = vmatpush1.msra.mxu0 %v360
    %686 = vmatprep.subr.mxu0 %v365
    %687 = vmatpush1.msra.mxu0 %v364
    %688 = vmatprep.subr.mxu0 %v369
    %689 = vmatpush1.msra.mxu0 %v368
    %690 = vmatprep.subr.mxu0 %v373
    %691 = vmatpush1.msra.mxu0 %v372
    %692 = vmatprep.subr.mxu0 %v377
    %693 = vmatpush1.msra.mxu0 %v376
    %694 = vmatprep.subr.mxu0 %v381
    %695 = vmatpush1.msra.mxu0 %v380
    %696 = vmatprep.subr.mxu0 %v385
    %697 = vmatpush1.msra.mxu0 %v384
    %698 = vmatprep.subr.mxu0 %v389
    %699 = vmatpush1.msra.mxu0 %v388
    %700 = vmatprep.subr.mxu0 %v393
    %701 = vmatpush1.msra.mxu0 %v392
    %702 = vmatprep.subr.mxu0 %v397
    %703 = vmatpush1.msra.mxu0 %v396
    %704 = vmatprep.subr.mxu0 %v401
    %705 = vmatpush1.msra.mxu0 %v400
    %706 = vmatprep.subr.mxu0 %v405
    %707 = vmatpush1.msra.mxu0 %v404
    %708 = vmatprep.subr.mxu0 %v409
    %709 = vmatpush1.msra.mxu0 %v408
    %710 = vmatprep.subr.mxu0 %v413
    %711 = vmatpush1.msra.mxu0 %v412
    %712 = vmatprep.subr.mxu0 %v417
    %713 = vmatpush1.msra.mxu0 %v416
    %714 = vmatprep.subr.mxu0 %v421
    %715 = vmatpush1.msra.mxu0 %v420
    %716 = vmatprep.mubr.f32.mxu0 %v38
    %717 = vmatmul.mubr.f32.gmra.mrb[0].mxu0 %v37
    %v718 = vpop.f32.mrb[0].mxu0
    %v719 = vadd.f32 %v648, %v718
    %v720 = vpop.f32.mrb[0].mxu0
    %v721 = vadd.f32 %v650, %v720
    %722 = vdwg.mxu0
    %723 = vmatprep.subr.mxu0 %v425
    %724 = vmatpush1.msra.mxu0 %v424
    %725 = vmatprep.subr.mxu0 %v429
    %726 = vmatpush1.msra.mxu0 %v428
    %727 = vmatprep.subr.mxu0 %v433
    %728 = vmatpush1.msra.mxu0 %v432
    %729 = vmatprep.subr.mxu0 %v437
    %730 = vmatpush1.msra.mxu0 %v436
    %731 = vmatprep.subr.mxu0 %v441
    %732 = vmatpush1.msra.mxu0 %v440
    %733 = vmatprep.subr.mxu0 %v445
    %734 = vmatpush1.msra.mxu0 %v444
    %735 = vmatprep.subr.mxu0 %v449
    %736 = vmatpush1.msra.mxu0 %v448
    %737 = vmatprep.subr.mxu0 %v453
    %738 = vmatpush1.msra.mxu0 %v452
    %739 = vmatprep.subr.mxu0 %v457
    %740 = vmatpush1.msra.mxu0 %v456
    %741 = vmatprep.subr.mxu0 %v461
    %742 = vmatpush1.msra.mxu0 %v460
    %743 = vmatprep.subr.mxu0 %v465
    %744 = vmatpush1.msra.mxu0 %v464
    %745 = vmatprep.subr.mxu0 %v469
    %746 = vmatpush1.msra.mxu0 %v468
    %747 = vmatprep.subr.mxu0 %v473
    %748 = vmatpush1.msra.mxu0 %v472
    %749 = vmatprep.subr.mxu0 %v477
    %750 = vmatpush1.msra.mxu0 %v476
    %751 = vmatprep.subr.mxu0 %v481
    %752 = vmatpush1.msra.mxu0 %v480
    %753 = vmatprep.subr.mxu0 %v485
    %754 = vmatpush1.msra.mxu0 %v484
    %755 = vmatprep.subr.mxu0 0.0
    %756 = vmatpush1.msra.mxu0 0.0
    %757 = vmatprep.subr.mxu0 0.0
    %758 = vmatpush1.msra.mxu0 0.0
    %759 = vmatprep.subr.mxu0 0.0
    %760 = vmatpush1.msra.mxu0 0.0
    %761 = vmatprep.subr.mxu0 0.0
    %762 = vmatpush1.msra.mxu0 0.0
    %763 = vmatprep.subr.mxu0 0.0
    %764 = vmatpush1.msra.mxu0 0.0
    %765 = vmatprep.subr.mxu0 0.0
    %766 = vmatpush1.msra.mxu0 0.0
    %767 = vmatprep.subr.mxu0 0.0
    %768 = vmatpush1.msra.mxu0 0.0
    %769 = vmatprep.subr.mxu0 0.0
    %770 = vmatpush1.msra.mxu0 0.0
    %771 = vmatprep.subr.mxu0 0.0
    %772 = vmatpush1.msra.mxu0 0.0
    %773 = vmatprep.subr.mxu0 0.0
    %774 = vmatpush1.msra.mxu0 0.0
    %775 = vmatprep.subr.mxu0 0.0
    %776 = vmatpush1.msra.mxu0 0.0
    %777 = vmatprep.subr.mxu0 0.0
    %778 = vmatpush1.msra.mxu0 0.0
    %779 = vmatprep.subr.mxu0 0.0
    %780 = vmatpush1.msra.mxu0 0.0
    %781 = vmatprep.subr.mxu0 0.0
    %782 = vmatpush1.msra.mxu0 0.0
    %783 = vmatprep.subr.mxu0 0.0
    %784 = vmatpush1.msra.mxu0 0.0
    %785 = vmatprep.subr.mxu0 0.0
    %786 = vmatpush1.msra.mxu0 0.0
    %787 = vmatprep.mubr.f32.mxu0 0.0
    %788 = vmatmul.mubr.f32.gmra.mrb[0].mxu0 %v39
    %v789 = vpop.f32.mrb[0].mxu0
    %v790 = vadd.f32 %v719, %v789
    %v791 = vpop.f32.mrb[0].mxu0
    %v792 = vadd.f32 %v721, %v791
    %793 = vdwg.mxu0
    %794 = vmatprep.subr.mxu0 %v43
    %795 = vmatpush1.msra.mxu0 %v42
    %796 = vmatprep.subr.mxu0 %v47
    %797 = vmatpush1.msra.mxu0 %v46
    %798 = vmatprep.subr.mxu0 %v51
    %799 = vmatpush1.msra.mxu0 %v50
    %800 = vmatprep.subr.mxu0 %v55
    %801 = vmatpush1.msra.mxu0 %v54
    %802 = vmatprep.subr.mxu0 %v59
    %803 = vmatpush1.msra.mxu0 %v58
    %804 = vmatprep.subr.mxu0 %v63
    %805 = vmatpush1.msra.mxu0 %v62
    %806 = vmatprep.subr.mxu0 %v67
    %807 = vmatpush1.msra.mxu0 %v66
    %808 = vmatprep.subr.mxu0 %v71
    %809 = vmatpush1.msra.mxu0 %v70
    %810 = vmatprep.subr.mxu0 %v75
    %811 = vmatpush1.msra.mxu0 %v74
    %812 = vmatprep.subr.mxu0 %v79
    %813 = vmatpush1.msra.mxu0 %v78
    %814 = vmatprep.subr.mxu0 %v83
    %815 = vmatpush1.msra.mxu0 %v82
    %816 = vmatprep.subr.mxu0 %v87
    %817 = vmatpush1.msra.mxu0 %v86
    %818 = vmatprep.subr.mxu0 %v91
    %819 = vmatpush1.msra.mxu0 %v90
    %820 = vmatprep.subr.mxu0 %v95
    %821 = vmatpush1.msra.mxu0 %v94
    %822 = vmatprep.subr.mxu0 %v99
    %823 = vmatpush1.msra.mxu0 %v98
    %824 = vmatprep.subr.mxu0 %v103
    %825 = vmatpush1.msra.mxu0 %v102
    %826 = vmatprep.subr.mxu0 %v107
    %827 = vmatpush1.msra.mxu0 %v106
    %828 = vmatprep.subr.mxu0 %v111
    %829 = vmatpush1.msra.mxu0 %v110
    %830 = vmatprep.subr.mxu0 %v115
    %831 = vmatpush1.msra.mxu0 %v114
    %832 = vmatprep.subr.mxu0 %v119
    %833 = vmatpush1.msra.mxu0 %v118
    %834 = vmatprep.subr.mxu0 %v123
    %835 = vmatpush1.msra.mxu0 %v122
    %836 = vmatprep.subr.mxu0 %v127
    %837 = vmatpush1.msra.mxu0 %v126
    %838 = vmatprep.subr.mxu0 %v131
    %839 = vmatpush1.msra.mxu0 %v130
    %840 = vmatprep.subr.mxu0 %v135
    %841 = vmatpush1.msra.mxu0 %v134
    %842 = vmatprep.subr.mxu0 %v139
    %843 = vmatpush1.msra.mxu0 %v138
    %844 = vmatprep.subr.mxu0 %v143
    %845 = vmatpush1.msra.mxu0 %v142
    %846 = vmatprep.subr.mxu0 %v147
    %847 = vmatpush1.msra.mxu0 %v146
    %848 = vmatprep.subr.mxu0 %v151
    %849 = vmatpush1.msra.mxu0 %v150
    %850 = vmatprep.subr.mxu0 %v155
    %851 = vmatpush1.msra.mxu0 %v154
    %852 = vmatprep.subr.mxu0 %v159
    %853 = vmatpush1.msra.mxu0 %v158
    %854 = vmatprep.subr.mxu0 %v163
    %855 = vmatpush1.msra.mxu0 %v162
    %856 = vmatprep.subr.mxu0 %v167
    %857 = vmatpush1.msra.mxu0 %v166
    %858 = vmatprep.mubr.f32.mxu0 %v34
    %859 = vmatmul.mubr.f32.gmra.mrb[0].mxu0 %v33
    %v860 = vpop.f32.mrb[0].mxu0
    %v861 = vadd.f32 %v501, %v860
    %v862 = vpop.f32.mrb[0].mxu0
    %v863 = vadd.f32 %v505, %v862
    %864 = vdwg.mxu0
    %865 = vmatprep.subr.mxu0 %v171
    %866 = vmatpush1.msra.mxu0 %v170
    %867 = vmatprep.subr.mxu0 %v175
    %868 = vmatpush1.msra.mxu0 %v174
    %869 = vmatprep.subr.mxu0 %v179
    %870 = vmatpush1.msra.mxu0 %v178
    %871 = vmatprep.subr.mxu0 %v183
    %872 = vmatpush1.msra.mxu0 %v182
    %873 = vmatprep.subr.mxu0 %v187
    %874 = vmatpush1.msra.mxu0 %v186
    %875 = vmatprep.subr.mxu0 %v191
    %876 = vmatpush1.msra.mxu0 %v190
    %877 = vmatprep.subr.mxu0 %v195
    %878 = vmatpush1.msra.mxu0 %v194
    %879 = vmatprep.subr.mxu0 %v199
    %880 = vmatpush1.msra.mxu0 %v198
    %881 = vmatprep.subr.mxu0 %v203
    %882 = vmatpush1.msra.mxu0 %v202
    %883 = vmatprep.subr.mxu0 %v207
    %884 = vmatpush1.msra.mxu0 %v206
    %885 = vmatprep.subr.mxu0 %v211
    %886 = vmatpush1.msra.mxu0 %v210
    %887 = vmatprep.subr.mxu0 %v215
    %888 = vmatpush1.msra.mxu0 %v214
    %889 = vmatprep.subr.mxu0 %v219
    %890 = vmatpush1.msra.mxu0 %v218
    %891 = vmatprep.subr.mxu0 %v223
    %892 = vmatpush1.msra.mxu0 %v222
    %893 = vmatprep.subr.mxu0 %v227
    %894 = vmatpush1.msra.mxu0 %v226
    %895 = vmatprep.subr.mxu0 %v231
    %896 = vmatpush1.msra.mxu0 %v230
    %897 = vmatprep.subr.mxu0 %v235
    %898 = vmatpush1.msra.mxu0 %v234
    %899 = vmatprep.subr.mxu0 %v239
    %900 = vmatpush1.msra.mxu0 %v238
    %901 = vmatprep.subr.mxu0 %v243
    %902 = vmatpush1.msra.mxu0 %v242
    %903 = vmatprep.subr.mxu0 %v247
    %904 = vmatpush1.msra.mxu0 %v246
    %905 = vmatprep.subr.mxu0 %v251
    %906 = vmatpush1.msra.mxu0 %v250
    %907 = vmatprep.subr.mxu0 %v255
    %908 = vmatpush1.msra.mxu0 %v254
    %909 = vmatprep.subr.mxu0 %v259
    %910 = vmatpush1.msra.mxu0 %v258
    %911 = vmatprep.subr.mxu0 %v263
    %912 = vmatpush1.msra.mxu0 %v262
    %913 = vmatprep.subr.mxu0 %v267
    %914 = vmatpush1.msra.mxu0 %v266
    %915 = vmatprep.subr.mxu0 %v271
    %916 = vmatpush1.msra.mxu0 %v270
    %917 = vmatprep.subr.mxu0 %v275
    %918 = vmatpush1.msra.mxu0 %v274
    %919 = vmatprep.subr.mxu0 %v279
    %920 = vmatpush1.msra.mxu0 %v278
    %921 = vmatprep.subr.mxu0 %v283
    %922 = vmatpush1.msra.mxu0 %v282
    %923 = vmatprep.subr.mxu0 %v287
    %924 = vmatpush1.msra.mxu0 %v286
    %925 = vmatprep.subr.mxu0 %v291
    %926 = vmatpush1.msra.mxu0 %v290
    %927 = vmatprep.subr.mxu0 %v295
    %928 = vmatpush1.msra.mxu0 %v294
    %929 = vmatprep.mubr.f32.mxu0 %v36
    %930 = vmatmul.mubr.f32.gmra.mrb[0].mxu0 %v35
    %v931 = vpop.f32.mrb[0].mxu0
    %v932 = vadd.f32 %v861, %v931
    %v933 = vpop.f32.mrb[0].mxu0
    %v934 = vadd.f32 %v863, %v933
    %935 = vdwg.mxu0
    %936 = vmatprep.subr.mxu0 %v299
    %937 = vmatpush1.msra.mxu0 %v298
    %938 = vmatprep.subr.mxu0 %v303
    %939 = vmatpush1.msra.mxu0 %v302
    %940 = vmatprep.subr.mxu0 %v307
    %941 = vmatpush1.msra.mxu0 %v306
    %942 = vmatprep.subr.mxu0 %v311
    %943 = vmatpush1.msra.mxu0 %v310
    %944 = vmatprep.subr.mxu0 %v315
    %945 = vmatpush1.msra.mxu0 %v314
    %946 = vmatprep.subr.mxu0 %v319
    %947 = vmatpush1.msra.mxu0 %v318
    %948 = vmatprep.subr.mxu0 %v323
    %949 = vmatpush1.msra.mxu0 %v322
    %950 = vmatprep.subr.mxu0 %v327
    %951 = vmatpush1.msra.mxu0 %v326
    %952 = vmatprep.subr.mxu0 %v331
    %953 = vmatpush1.msra.mxu0 %v330
    %954 = vmatprep.subr.mxu0 %v335
    %955 = vmatpush1.msra.mxu0 %v334
    %956 = vmatprep.subr.mxu0 %v339
    %957 = vmatpush1.msra.mxu0 %v338
    %958 = vmatprep.subr.mxu0 %v343
    %959 = vmatpush1.msra.mxu0 %v342
    %960 = vmatprep.subr.mxu0 %v347
    %961 = vmatpush1.msra.mxu0 %v346
    %962 = vmatprep.subr.mxu0 %v351
    %963 = vmatpush1.msra.mxu0 %v350
    %964 = vmatprep.subr.mxu0 %v355
    %965 = vmatpush1.msra.mxu0 %v354
    %966 = vmatprep.subr.mxu0 %v359
    %967 = vmatpush1.msra.mxu0 %v358
    %968 = vmatprep.subr.mxu0 %v363
    %969 = vmatpush1.msra.mxu0 %v362
    %970 = vmatprep.subr.mxu0 %v367
    %971 = vmatpush1.msra.mxu0 %v366
    %972 = vmatprep.subr.mxu0 %v371
    %973 = vmatpush1.msra.mxu0 %v370
    %974 = vmatprep.subr.mxu0 %v375
    %975 = vmatpush1.msra.mxu0 %v374
    %976 = vmatprep.subr.mxu0 %v379
    %977 = vmatpush1.msra.mxu0 %v378
    %978 = vmatprep.subr.mxu0 %v383
    %979 = vmatpush1.msra.mxu0 %v382
    %980 = vmatprep.subr.mxu0 %v387
    %981 = vmatpush1.msra.mxu0 %v386
    %982 = vmatprep.subr.mxu0 %v391
    %983 = vmatpush1.msra.mxu0 %v390
    %984 = vmatprep.subr.mxu0 %v395
    %985 = vmatpush1.msra.mxu0 %v394
    %986 = vmatprep.subr.mxu0 %v399
    %987 = vmatpush1.msra.mxu0 %v398
    %988 = vmatprep.subr.mxu0 %v403
    %989 = vmatpush1.msra.mxu0 %v402
    %990 = vmatprep.subr.mxu0 %v407
    %991 = vmatpush1.msra.mxu0 %v406
    %992 = vmatprep.subr.mxu0 %v411
    %993 = vmatpush1.msra.mxu0 %v410
    %994 = vmatprep.subr.mxu0 %v415
    %995 = vmatpush1.msra.mxu0 %v414
    %996 = vmatprep.subr.mxu0 %v419
    %997 = vmatpush1.msra.mxu0 %v418
    %998 = vmatprep.subr.mxu0 %v423
    %999 = vmatpush1.msra.mxu0 %v422
    %1000 = vmatprep.mubr.f32.mxu0 %v38
    %1001 = vmatmul.mubr.f32.gmra.mrb[0].mxu0 %v37
    %v1002 = vpop.f32.mrb[0].mxu0
    %v1003 = vadd.f32 %v932, %v1002
    %v1004 = vpop.f32.mrb[0].mxu0
    %v1005 = vadd.f32 %v934, %v1004
    %1006 = vdwg.mxu0
    %1007 = vmatprep.subr.mxu0 %v427
    %1008 = vmatpush1.msra.mxu0 %v426
    %1009 = vmatprep.subr.mxu0 %v431
    %1010 = vmatpush1.msra.mxu0 %v430
    %1011 = vmatprep.subr.mxu0 %v435
    %1012 = vmatpush1.msra.mxu0 %v434
    %1013 = vmatprep.subr.mxu0 %v439
    %1014 = vmatpush1.msra.mxu0 %v438
    %1015 = vmatprep.subr.mxu0 %v443
    %1016 = vmatpush1.msra.mxu0 %v442
    %1017 = vmatprep.subr.mxu0 %v447
    %1018 = vmatpush1.msra.mxu0 %v446
    %1019 = vmatprep.subr.mxu0 %v451
    %1020 = vmatpush1.msra.mxu0 %v450
    %1021 = vmatprep.subr.mxu0 %v455
    %1022 = vmatpush1.msra.mxu0 %v454
    %1023 = vmatprep.subr.mxu0 %v459
    %1024 = vmatpush1.msra.mxu0 %v458
    %1025 = vmatprep.subr.mxu0 %v463
    %1026 = vmatpush1.msra.mxu0 %v462
    %1027 = vmatprep.subr.mxu0 %v467
    %1028 = vmatpush1.msra.mxu0 %v466
    %1029 = vmatprep.subr.mxu0 %v471
    %1030 = vmatpush1.msra.mxu0 %v470
    %1031 = vmatprep.subr.mxu0 %v475
    %1032 = vmatpush1.msra.mxu0 %v474
    %1033 = vmatprep.subr.mxu0 %v479
    %1034 = vmatpush1.msra.mxu0 %v478
    %1035 = vmatprep.subr.mxu0 %v483
    %1036 = vmatpush1.msra.mxu0 %v482
    %1037 = vmatprep.subr.mxu0 %v487
    %1038 = vmatpush1.msra.mxu0 %v486
    %1039 = vmatprep.subr.mxu0 0.0
    %1040 = vmatpush1.msra.mxu0 0.0
    %1041 = vmatprep.subr.mxu0 0.0
    %1042 = vmatpush1.msra.mxu0 0.0
    %1043 = vmatprep.subr.mxu0 0.0
    %1044 = vmatpush1.msra.mxu0 0.0
    %1045 = vmatprep.subr.mxu0 0.0
    %1046 = vmatpush1.msra.mxu0 0.0
    %1047 = vmatprep.subr.mxu0 0.0
    %1048 = vmatpush1.msra.mxu0 0.0
    %1049 = vmatprep.subr.mxu0 0.0
    %1050 = vmatpush1.msra.mxu0 0.0
    %1051 = vmatprep.subr.mxu0 0.0
    %1052 = vmatpush1.msra.mxu0 0.0
    %1053 = vmatprep.subr.mxu0 0.0
    %1054 = vmatpush1.msra.mxu0 0.0
    %1055 = vmatprep.subr.mxu0 0.0
    %1056 = vmatpush1.msra.mxu0 0.0
    %1057 = vmatprep.subr.mxu0 0.0
    %1058 = vmatpush1.msra.mxu0 0.0
    %1059 = vmatprep.subr.mxu0 0.0
    %1060 = vmatpush1.msra.mxu0 0.0
    %1061 = vmatprep.subr.mxu0 0.0
    %1062 = vmatpush1.msra.mxu0 0.0
    %1063 = vmatprep.subr.mxu0 0.0
    %1064 = vmatpush1.msra.mxu0 0.0
    %1065 = vmatprep.subr.mxu0 0.0
    %1066 = vmatpush1.msra.mxu0 0.0
    %1067 = vmatprep.subr.mxu0 0.0
    %1068 = vmatpush1.msra.mxu0 0.0
    %1069 = vmatprep.subr.mxu0 0.0
    %1070 = vmatpush1.msra.mxu0 0.0
    %1071 = vmatprep.mubr.f32.mxu0 0.0
    %1072 = vmatmul.mubr.f32.gmra.mrb[0].mxu0 %v39
    %v1073 = vpop.f32.mrb[0].mxu0
    %v1074 = vadd.f32 %v1003, %v1073
    %v1075 = vpop.f32.mrb[0].mxu0
    %v1076 = vadd.f32 %v1005, %v1075
    %1077 = vdwg.mxu0
    %v1078 = vmax.f32 %v790, 0.0
    %v1079 = vmax.f32 %v792, 0.0
    %v1080 = vmax.f32 %v1074, 0.0
    %v1081 = vmax.f32 %v1076, 0.0
    %v1082 = vld [vmem:[%s3] sm:$0xff]
    %v1083 = vld [vmem:[%s3 + $0x8] sm:$0xff]
    %v1084 = vld [vmem:[%s3 + $0x10] sm:$0xff]
    %v1085 = vld [vmem:[%s3 + $0x18] sm:$0xff]
    %v1086 = vld [vmem:[%s3 + $0x20] sm:$0xff]
    %v1087 = vld [vmem:[%s3 + $0x28] sm:$0xff]
    %v1088 = vld [vmem:[%s3 + $0x30] sm:$0xff]
    %v1089 = vld [vmem:[%s3 + $0x38] sm:$0xff]
    %v1090 = vld [vmem:[%s3 + $0x40] sm:$0xff]
    %v1091 = vld [vmem:[%s3 + $0x48] sm:$0xff]
    %v1092 = vld [vmem:[%s3 + $0x50] sm:$0xff]
    %v1093 = vld [vmem:[%s3 + $0x58] sm:$0xff]
    %v1094 = vld [vmem:[%s3 + $0x60] sm:$0xff]
    %v1095 = vld [vmem:[%s3 + $0x68] sm:$0xff]
    %v1096 = vld [vmem:[%s3 + $0x70] sm:$0xff]
    %v1097 = vld [vmem:[%s3 + $0x78] sm:$0xff]
    %v1098 = vld [vmem:[%s3 + $0x80] sm:$0xff]
    %v1099 = vld [vmem:[%s3 + $0x88] sm:$0xff]
    %v1100 = vld [vmem:[%s3 + $0x90] sm:$0xff]
    %v1101 = vld [vmem:[%s3 + $0x98] sm:$0xff]
    %v1102 = vld [vmem:[%s3 + $0xa0] sm:$0xff]
    %v1103 = vld [vmem:[%s3 + $0xa8] sm:$0xff]
    %v1104 = vld [vmem:[%s3 + $0xb0] sm:$0xff]
    %v1105 = vld [vmem:[%s3 + $0xb8] sm:$0xff]
    %v1106 = vld [vmem:[%s3 + $0xc0] sm:$0xff]
    %v1107 = vld [vmem:[%s3 + $0xc8] sm:$0xff]
    %v1108 = vld [vmem:[%s3 + $0xd0] sm:$0xff]
    %v1109 = vld [vmem:[%s3 + $0xd8] sm:$0xff]
    %v1110 = vld [vmem:[%s3 + $0xe0] sm:$0xff]
    %v1111 = vld [vmem:[%s3 + $0xe8] sm:$0xff]
    %v1112 = vld [vmem:[%s3 + $0xf0] sm:$0xff]
    %v1113 = vld [vmem:[%s3 + $0xf8] sm:$0xff]
    %v1114 = vld [vmem:[%s3 + $0x100] sm:$0xff]
    %v1115 = vld [vmem:[%s3 + $0x108] sm:$0xff]
    %v1116 = vld [vmem:[%s3 + $0x110] sm:$0xff]
    %v1117 = vld [vmem:[%s3 + $0x118] sm:$0xff]
    %v1118 = vld [vmem:[%s3 + $0x120] sm:$0xff]
    %v1119 = vld [vmem:[%s3 + $0x128] sm:$0xff]
    %v1120 = vld [vmem:[%s3 + $0x130] sm:$0xff]
    %v1121 = vld [vmem:[%s3 + $0x138] sm:$0xff]
    %v1122 = vld [vmem:[%s3 + $0x140] sm:$0xff]
    %v1123 = vld [vmem:[%s3 + $0x148] sm:$0xff]
    %v1124 = vld [vmem:[%s3 + $0x150] sm:$0xff]
    %v1125 = vld [vmem:[%s3 + $0x158] sm:$0xff]
    %v1126 = vld [vmem:[%s3 + $0x160] sm:$0xff]
    %v1127 = vld [vmem:[%s3 + $0x168] sm:$0xff]
    %v1128 = vld [vmem:[%s3 + $0x170] sm:$0xff]
    %v1129 = vld [vmem:[%s3 + $0x178] sm:$0xff]
    %v1130 = vld [vmem:[%s3 + $0x180] sm:$0xff]
    %v1131 = vld [vmem:[%s3 + $0x188] sm:$0xff]
    %v1132 = vld [vmem:[%s3 + $0x190] sm:$0xff]
    %v1133 = vld [vmem:[%s3 + $0x198] sm:$0xff]
    %v1134 = vld [vmem:[%s3 + $0x1a0] sm:$0xff]
    %v1135 = vld [vmem:[%s3 + $0x1a8] sm:$0xff]
    %v1136 = vld [vmem:[%s3 + $0x1b0] sm:$0xff]
    %v1137 = vld [vmem:[%s3 + $0x1b8] sm:$0xff]
    %v1138 = vld [vmem:[%s3 + $0x1c0] sm:$0xff]
    %v1139 = vld [vmem:[%s3 + $0x1c8] sm:$0xff]
    %v1140 = vld [vmem:[%s3 + $0x1d0] sm:$0xff]
    %v1141 = vld [vmem:[%s3 + $0x1d8] sm:$0xff]
    %v1142 = vld [vmem:[%s3 + $0x1e0] sm:$0xff]
    %v1143 = vld [vmem:[%s3 + $0x1e8] sm:$0xff]
    %v1144 = vld [vmem:[%s3 + $0x1f0] sm:$0xff]
    %v1145 = vld [vmem:[%s3 + $0x1f8] sm:$0xff]
    %v1146 = vld [vmem:[%s3 + $0x200] sm:$0xff]
    %v1147 = vld [vmem:[%s3 + $0x208] sm:$0xff]
    %v1148 = vld [vmem:[%s3 + $0x210] sm:$0xff]
    %v1149 = vld [vmem:[%s3 + $0x218] sm:$0xff]
    %v1150 = vld [vmem:[%s3 + $0x220] sm:$0xff]
    %v1151 = vld [vmem:[%s3 + $0x228] sm:$0xff]
    %v1152 = vld [vmem:[%s3 + $0x230] sm:$0xff]
    %v1153 = vld [vmem:[%s3 + $0x238] sm:$0xff]
    %v1154 = vld [vmem:[%s3 + $0x240] sm:$0xff]
    %v1155 = vld [vmem:[%s3 + $0x248] sm:$0xff]
    %v1156 = vld [vmem:[%s3 + $0x250] sm:$0xff]
    %v1157 = vld [vmem:[%s3 + $0x258] sm:$0xff]
    %v1158 = vld [vmem:[%s3 + $0x260] sm:$0xff]
    %v1159 = vld [vmem:[%s3 + $0x268] sm:$0xff]
    %v1160 = vld [vmem:[%s3 + $0x270] sm:$0xff]
    %v1161 = vld [vmem:[%s3 + $0x278] sm:$0xff]
    %v1162 = vld [vmem:[%s3 + $0x280] sm:$0xff]
    %v1163 = vld [vmem:[%s3 + $0x288] sm:$0xff]
    %v1164 = vld [vmem:[%s3 + $0x290] sm:$0xff]
    %v1165 = vld [vmem:[%s3 + $0x298] sm:$0xff]
    %v1166 = vld [vmem:[%s3 + $0x2a0] sm:$0xff]
    %v1167 = vld [vmem:[%s3 + $0x2a8] sm:$0xff]
    %v1168 = vld [vmem:[%s3 + $0x2b0] sm:$0xff]
    %v1169 = vld [vmem:[%s3 + $0x2b8] sm:$0xff]
    %v1170 = vld [vmem:[%s3 + $0x2c0] sm:$0xff]
    %v1171 = vld [vmem:[%s3 + $0x2c8] sm:$0xff]
    %v1172 = vld [vmem:[%s3 + $0x2d0] sm:$0xff]
    %v1173 = vld [vmem:[%s3 + $0x2d8] sm:$0xff]
    %v1174 = vld [vmem:[%s3 + $0x2e0] sm:$0xff]
    %v1175 = vld [vmem:[%s3 + $0x2e8] sm:$0xff]
    %v1176 = vld [vmem:[%s3 + $0x2f0] sm:$0xff]
    %v1177 = vld [vmem:[%s3 + $0x2f8] sm:$0xff]
    %v1178 = vld [vmem:[%s3 + $0x300] sm:$0xff]
    %v1179 = vld [vmem:[%s3 + $0x308] sm:$0xff]
    %v1180 = vld [vmem:[%s3 + $0x310] sm:$0xff]
    %v1181 = vld [vmem:[%s3 + $0x318] sm:$0xff]
    %v1182 = vld [vmem:[%s3 + $0x320] sm:$0xff]
    %v1183 = vld [vmem:[%s3 + $0x328] sm:$0xff]
    %v1184 = vld [vmem:[%s3 + $0x330] sm:$0xff]
    %v1185 = vld [vmem:[%s3 + $0x338] sm:$0xff]
    %v1186 = vld [vmem:[%s3 + $0x340] sm:$0xff]
    %v1187 = vld [vmem:[%s3 + $0x348] sm:$0xff]
    %v1188 = vld [vmem:[%s3 + $0x350] sm:$0xff]
    %v1189 = vld [vmem:[%s3 + $0x358] sm:$0xff]
    %v1190 = vld [vmem:[%s3 + $0x360] sm:$0xff]
    %v1191 = vld [vmem:[%s3 + $0x368] sm:$0xff]
    %v1192 = vld [vmem:[%s3 + $0x370] sm:$0xff]
    %v1193 = vld [vmem:[%s3 + $0x378] sm:$0xff]
    %v1194 = vld [vmem:[%s3 + $0x380] sm:$0xff]
    %v1195 = vld [vmem:[%s3 + $0x388] sm:$0xff]
    %v1196 = vld [vmem:[%s3 + $0x390] sm:$0xff]
    %v1197 = vld [vmem:[%s3 + $0x398] sm:$0xff]
    %v1198 = vld [vmem:[%s3 + $0x3a0] sm:$0xff]
    %v1199 = vld [vmem:[%s3 + $0x3a8] sm:$0xff]
    %v1200 = vld [vmem:[%s3 + $0x3b0] sm:$0xff]
    %v1201 = vld [vmem:[%s3 + $0x3b8] sm:$0xff]
    %v1202 = vld [vmem:[%s3 + $0x3c0] sm:$0xff]
    %v1203 = vld [vmem:[%s3 + $0x3c8] sm:$0xff]
    %v1204 = vld [vmem:[%s3 + $0x3d0] sm:$0xff]
    %v1205 = vld [vmem:[%s3 + $0x3d8] sm:$0xff]
    %v1206 = vld [vmem:[%s3 + $0x3e0] sm:$0xff]
    %v1207 = vld [vmem:[%s3 + $0x3e8] sm:$0xff]
    %v1208 = vld [vmem:[%s3 + $0x3f0] sm:$0xff]
    %v1209 = vld [vmem:[%s3 + $0x3f8] sm:$0xff]
    %v1210 = vld [vmem:[%s4] sm:$0x3]
    %v1212 = vlaneseq
    %v1213 = vshrl.u32 %v1212, 7
    %v1214 = vsub.s32 0, %v1213
    %v1215 = vrot.slane %v1210, %v1214
    %v1216 = vlaneseq
    %v1217 = vshrl.u32 %v1216, 7
    %v1218 = vsub.s32 1, %v1217
    %v1219 = vrot.slane %v1210, %v1218
    %1222 = vmatprep.subr.mxu0 %v1083
    %1223 = vmatpush1.msra.mxu0 %v1082
    %1224 = vmatprep.subr.mxu0 %v1085
    %1225 = vmatpush1.msra.mxu0 %v1084
    %1226 = vmatprep.subr.mxu0 %v1087
    %1227 = vmatpush1.msra.mxu0 %v1086
    %1228 = vmatprep.subr.mxu0 %v1089
    %1229 = vmatpush1.msra.mxu0 %v1088
    %1230 = vmatprep.subr.mxu0 %v1091
    %1231 = vmatpush1.msra.mxu0 %v1090
    %1232 = vmatprep.subr.mxu0 %v1093
    %1233 = vmatpush1.msra.mxu0 %v1092
    %1234 = vmatprep.subr.mxu0 %v1095
    %1235 = vmatpush1.msra.mxu0 %v1094
    %1236 = vmatprep.subr.mxu0 %v1097
    %1237 = vmatpush1.msra.mxu0 %v1096
    %1238 = vmatprep.subr.mxu0 %v1099
    %1239 = vmatpush1.msra.mxu0 %v1098
    %1240 = vmatprep.subr.mxu0 %v1101
    %1241 = vmatpush1.msra.mxu0 %v1100
    %1242 = vmatprep.subr.mxu0 %v1103
    %1243 = vmatpush1.msra.mxu0 %v1102
    %1244 = vmatprep.subr.mxu0 %v1105
    %1245 = vmatpush1.msra.mxu0 %v1104
    %1246 = vmatprep.subr.mxu0 %v1107
    %1247 = vmatpush1.msra.mxu0 %v1106
    %1248 = vmatprep.subr.mxu0 %v1109
    %1249 = vmatpush1.msra.mxu0 %v1108
    %1250 = vmatprep.subr.mxu0 %v1111
    %1251 = vmatpush1.msra.mxu0 %v1110
    %1252 = vmatprep.subr.mxu0 %v1113
    %1253 = vmatpush1.msra.mxu0 %v1112
    %1254 = vmatprep.subr.mxu0 %v1115
    %1255 = vmatpush1.msra.mxu0 %v1114
    %1256 = vmatprep.subr.mxu0 %v1117
    %1257 = vmatpush1.msra.mxu0 %v1116
    %1258 = vmatprep.subr.mxu0 %v1119
    %1259 = vmatpush1.msra.mxu0 %v1118
    %1260 = vmatprep.subr.mxu0 %v1121
    %1261 = vmatpush1.msra.mxu0 %v1120
    %1262 = vmatprep.subr.mxu0 %v1123
    %1263 = vmatpush1.msra.mxu0 %v1122
    %1264 = vmatprep.subr.mxu0 %v1125
    %1265 = vmatpush1.msra.mxu0 %v1124
    %1266 = vmatprep.subr.mxu0 %v1127
    %1267 = vmatpush1.msra.mxu0 %v1126
    %1268 = vmatprep.subr.mxu0 %v1129
    %1269 = vmatpush1.msra.mxu0 %v1128
    %1270 = vmatprep.subr.mxu0 %v1131
    %1271 = vmatpush1.msra.mxu0 %v1130
    %1272 = vmatprep.subr.mxu0 %v1133
    %1273 = vmatpush1.msra.mxu0 %v1132
    %1274 = vmatprep.subr.mxu0 %v1135
    %1275 = vmatpush1.msra.mxu0 %v1134
    %1276 = vmatprep.subr.mxu0 %v1137
    %1277 = vmatpush1.msra.mxu0 %v1136
    %1278 = vmatprep.subr.mxu0 %v1139
    %1279 = vmatpush1.msra.mxu0 %v1138
    %1280 = vmatprep.subr.mxu0 %v1141
    %1281 = vmatpush1.msra.mxu0 %v1140
    %1282 = vmatprep.subr.mxu0 %v1143
    %1283 = vmatpush1.msra.mxu0 %v1142
    %1284 = vmatprep.subr.mxu0 %v1145
    %1285 = vmatpush1.msra.mxu0 %v1144
    %1286 = vmatprep.mubr.f32.mxu0 %v1079
    %1287 = vmatmul.mubr.f32.gmra.mrb[0].mxu0 %v1078
    %v1288 = vpop.f32.mrb[0].mxu0
    %v1289 = vadd.f32 %v1215, %v1288
    %v1290 = vpop.f32.mrb[0].mxu0
    %v1291 = vadd.f32 %v1219, %v1290
    %1292 = vdwg.mxu0
    %1293 = vmatprep.subr.mxu0 %v1147
    %1294 = vmatpush1.msra.mxu0 %v1146
    %1295 = vmatprep.subr.mxu0 %v1149
    %1296 = vmatpush1.msra.mxu0 %v1148
    %1297 = vmatprep.subr.mxu0 %v1151
    %1298 = vmatpush1.msra.mxu0 %v1150
    %1299 = vmatprep.subr.mxu0 %v1153
    %1300 = vmatpush1.msra.mxu0 %v1152
    %1301 = vmatprep.subr.mxu0 %v1155
    %1302 = vmatpush1.msra.mxu0 %v1154
    %1303 = vmatprep.subr.mxu0 %v1157
    %1304 = vmatpush1.msra.mxu0 %v1156
    %1305 = vmatprep.subr.mxu0 %v1159
    %1306 = vmatpush1.msra.mxu0 %v1158
    %1307 = vmatprep.subr.mxu0 %v1161
    %1308 = vmatpush1.msra.mxu0 %v1160
    %1309 = vmatprep.subr.mxu0 %v1163
    %1310 = vmatpush1.msra.mxu0 %v1162
    %1311 = vmatprep.subr.mxu0 %v1165
    %1312 = vmatpush1.msra.mxu0 %v1164
    %1313 = vmatprep.subr.mxu0 %v1167
    %1314 = vmatpush1.msra.mxu0 %v1166
    %1315 = vmatprep.subr.mxu0 %v1169
    %1316 = vmatpush1.msra.mxu0 %v1168
    %1317 = vmatprep.subr.mxu0 %v1171
    %1318 = vmatpush1.msra.mxu0 %v1170
    %1319 = vmatprep.subr.mxu0 %v1173
    %1320 = vmatpush1.msra.mxu0 %v1172
    %1321 = vmatprep.subr.mxu0 %v1175
    %1322 = vmatpush1.msra.mxu0 %v1174
    %1323 = vmatprep.subr.mxu0 %v1177
    %1324 = vmatpush1.msra.mxu0 %v1176
    %1325 = vmatprep.subr.mxu0 %v1179
    %1326 = vmatpush1.msra.mxu0 %v1178
    %1327 = vmatprep.subr.mxu0 %v1181
    %1328 = vmatpush1.msra.mxu0 %v1180
    %1329 = vmatprep.subr.mxu0 %v1183
    %1330 = vmatpush1.msra.mxu0 %v1182
    %1331 = vmatprep.subr.mxu0 %v1185
    %1332 = vmatpush1.msra.mxu0 %v1184
    %1333 = vmatprep.subr.mxu0 %v1187
    %1334 = vmatpush1.msra.mxu0 %v1186
    %1335 = vmatprep.subr.mxu0 %v1189
    %1336 = vmatpush1.msra.mxu0 %v1188
    %1337 = vmatprep.subr.mxu0 %v1191
    %1338 = vmatpush1.msra.mxu0 %v1190
    %1339 = vmatprep.subr.mxu0 %v1193
    %1340 = vmatpush1.msra.mxu0 %v1192
    %1341 = vmatprep.subr.mxu0 %v1195
    %1342 = vmatpush1.msra.mxu0 %v1194
    %1343 = vmatprep.subr.mxu0 %v1197
    %1344 = vmatpush1.msra.mxu0 %v1196
    %1345 = vmatprep.subr.mxu0 %v1199
    %1346 = vmatpush1.msra.mxu0 %v1198
    %1347 = vmatprep.subr.mxu0 %v1201
    %1348 = vmatpush1.msra.mxu0 %v1200
    %1349 = vmatprep.subr.mxu0 %v1203
    %1350 = vmatpush1.msra.mxu0 %v1202
    %1351 = vmatprep.subr.mxu0 %v1205
    %1352 = vmatpush1.msra.mxu0 %v1204
    %1353 = vmatprep.subr.mxu0 %v1207
    %1354 = vmatpush1.msra.mxu0 %v1206
    %1355 = vmatprep.subr.mxu0 %v1209
    %1356 = vmatpush1.msra.mxu0 %v1208
    %1357 = vmatprep.mubr.f32.mxu0 %v1081
    %1358 = vmatmul.mubr.f32.gmra.mrb[0].mxu0 %v1080
    %v1359 = vpop.f32.mrb[0].mxu0
    %v1360 = vadd.f32 %v1289, %v1359
    %v1361 = vpop.f32.mrb[0].mxu0
    %v1362 = vadd.f32 %v1291, %v1361
    %1363 = vdwg.mxu0
    %v1364 = vmax.f32 %v1360, 0.0
    %v1365 = vmax.f32 %v1362, 0.0
    %v1366 = vld [vmem:[%s5] sm:$0xff]
    %v1367 = vld [vmem:[%s5 + $0x8] sm:$0xff]
    %v1368 = vld [vmem:[%s5 + $0x10] sm:$0xff]
    %v1369 = vld [vmem:[%s5 + $0x18] sm:$0xff]
    %v1370 = vld [vmem:[%s5 + $0x20] sm:$0xff]
    %v1371 = vld [vmem:[%s5 + $0x28] sm:$0xff]
    %v1372 = vld [vmem:[%s5 + $0x30] sm:$0xff]
    %v1373 = vld [vmem:[%s5 + $0x38] sm:$0xff]
    %v1374 = vld [vmem:[%s5 + $0x40] sm:$0xff]
    %v1375 = vld [vmem:[%s5 + $0x48] sm:$0xff]
    %v1376 = vld [vmem:[%s5 + $0x50] sm:$0xff]
    %v1377 = vld [vmem:[%s5 + $0x58] sm:$0xff]
    %v1378 = vld [vmem:[%s5 + $0x60] sm:$0xff]
    %v1379 = vld [vmem:[%s5 + $0x68] sm:$0xff]
    %v1380 = vld [vmem:[%s5 + $0x70] sm:$0xff]
    %v1381 = vld [vmem:[%s5 + $0x78] sm:$0xff]
    %v1382 = vld [vmem:[%s5 + $0x80] sm:$0xff]
    %v1383 = vld [vmem:[%s5 + $0x88] sm:$0xff]
    %v1384 = vld [vmem:[%s5 + $0x90] sm:$0xff]
    %v1385 = vld [vmem:[%s5 + $0x98] sm:$0xff]
    %v1386 = vld [vmem:[%s5 + $0xa0] sm:$0xff]
    %v1387 = vld [vmem:[%s5 + $0xa8] sm:$0xff]
    %v1388 = vld [vmem:[%s5 + $0xb0] sm:$0xff]
    %v1389 = vld [vmem:[%s5 + $0xb8] sm:$0xff]
    %v1390 = vld [vmem:[%s5 + $0xc0] sm:$0xff]
    %v1391 = vld [vmem:[%s5 + $0xc8] sm:$0xff]
    %v1392 = vld [vmem:[%s5 + $0xd0] sm:$0xff]
    %v1393 = vld [vmem:[%s5 + $0xd8] sm:$0xff]
    %v1394 = vld [vmem:[%s5 + $0xe0] sm:$0xff]
    %v1395 = vld [vmem:[%s5 + $0xe8] sm:$0xff]
    %v1396 = vld [vmem:[%s5 + $0xf0] sm:$0xff]
    %v1397 = vld [vmem:[%s5 + $0xf8] sm:$0xff]
    %v1398 = vld [vmem:[%s6] sm:$0x1]
    %v1400 = vlaneseq
    %v1401 = vshrl.u32 %v1400, 7
    %v1402 = vsub.s32 0, %v1401
    %v1403 = vrot.slane %v1398, %v1402
    %1405 = vmatprep.subr.mxu0 0.0
    %1406 = vmatpush1.msra.mxu0 %v1366
    %1407 = vmatprep.subr.mxu0 0.0
    %1408 = vmatpush1.msra.mxu0 %v1367
    %1409 = vmatprep.subr.mxu0 0.0
    %1410 = vmatpush1.msra.mxu0 %v1368
    %1411 = vmatprep.subr.mxu0 0.0
    %1412 = vmatpush1.msra.mxu0 %v1369
    %1413 = vmatprep.subr.mxu0 0.0
    %1414 = vmatpush1.msra.mxu0 %v1370
    %1415 = vmatprep.subr.mxu0 0.0
    %1416 = vmatpush1.msra.mxu0 %v1371
    %1417 = vmatprep.subr.mxu0 0.0
    %1418 = vmatpush1.msra.mxu0 %v1372
    %1419 = vmatprep.subr.mxu0 0.0
    %1420 = vmatpush1.msra.mxu0 %v1373
    %1421 = vmatprep.subr.mxu0 0.0
    %1422 = vmatpush1.msra.mxu0 %v1374
    %1423 = vmatprep.subr.mxu0 0.0
    %1424 = vmatpush1.msra.mxu0 %v1375
    %1425 = vmatprep.subr.mxu0 0.0
    %1426 = vmatpush1.msra.mxu0 %v1376
    %1427 = vmatprep.subr.mxu0 0.0
    %1428 = vmatpush1.msra.mxu0 %v1377
    %1429 = vmatprep.subr.mxu0 0.0
    %1430 = vmatpush1.msra.mxu0 %v1378
    %1431 = vmatprep.subr.mxu0 0.0
    %1432 = vmatpush1.msra.mxu0 %v1379
    %1433 = vmatprep.subr.mxu0 0.0
    %1434 = vmatpush1.msra.mxu0 %v1380
    %1435 = vmatprep.subr.mxu0 0.0
    %1436 = vmatpush1.msra.mxu0 %v1381
    %1437 = vmatprep.subr.mxu0 0.0
    %1438 = vmatpush1.msra.mxu0 %v1382
    %1439 = vmatprep.subr.mxu0 0.0
    %1440 = vmatpush1.msra.mxu0 %v1383
    %1441 = vmatprep.subr.mxu0 0.0
    %1442 = vmatpush1.msra.mxu0 %v1384
    %1443 = vmatprep.subr.mxu0 0.0
    %1444 = vmatpush1.msra.mxu0 %v1385
    %1445 = vmatprep.subr.mxu0 0.0
    %1446 = vmatpush1.msra.mxu0 %v1386
    %1447 = vmatprep.subr.mxu0 0.0
    %1448 = vmatpush1.msra.mxu0 %v1387
    %1449 = vmatprep.subr.mxu0 0.0
    %1450 = vmatpush1.msra.mxu0 %v1388
    %1451 = vmatprep.subr.mxu0 0.0
    %1452 = vmatpush1.msra.mxu0 %v1389
    %1453 = vmatprep.subr.mxu0 0.0
    %1454 = vmatpush1.msra.mxu0 %v1390
    %1455 = vmatprep.subr.mxu0 0.0
    %1456 = vmatpush1.msra.mxu0 %v1391
    %1457 = vmatprep.subr.mxu0 0.0
    %1458 = vmatpush1.msra.mxu0 %v1392
    %1459 = vmatprep.subr.mxu0 0.0
    %1460 = vmatpush1.msra.mxu0 %v1393
    %1461 = vmatprep.subr.mxu0 0.0
    %1462 = vmatpush1.msra.mxu0 %v1394
    %1463 = vmatprep.subr.mxu0 0.0
    %1464 = vmatpush1.msra.mxu0 %v1395
    %1465 = vmatprep.subr.mxu0 0.0
    %1466 = vmatpush1.msra.mxu0 %v1396
    %1467 = vmatprep.subr.mxu0 0.0
    %1468 = vmatpush1.msra.mxu0 %v1397
    %1469 = vmatprep.mubr.f32.mxu0 %v1365
    %1470 = vmatmul.mubr.f32.gmra.mrb[0].mxu0 %v1364
    %v1471 = vpop.f32.mrb[0].mxu0
    %v1472 = vadd.f32 %v1403, %v1471
    %v1473 = vpop.f32.mrb[0].mxu0
    %1474 = vdwg.mxu0
    %v1475 = vmax.f32 %v1472, 0.0
    %v1476 = vld [vmem:[%s7] sm:$0xff]
    %v1477 = vld [vmem:[%s7 + $0x8] sm:$0xff]
    %v1478 = vld [vmem:[%s7 + $0x10] sm:$0xff]
    %v1479 = vld [vmem:[%s7 + $0x18] sm:$0xff]
    %v1480 = vld [vmem:[%s7 + $0x20] sm:$0xff]
    %v1481 = vld [vmem:[%s7 + $0x28] sm:$0xff]
    %v1482 = vld [vmem:[%s7 + $0x30] sm:$0xff]
    %v1483 = vld [vmem:[%s7 + $0x38] sm:$0xff]
    %v1484 = vld [vmem:[%s7 + $0x40] sm:$0xff]
    %v1485 = vld [vmem:[%s7 + $0x48] sm:$0xff]
    %v1486 = vld [vmem:[%s7 + $0x50] sm:$0xff]
    %v1487 = vld [vmem:[%s7 + $0x58] sm:$0xff]
    %v1488 = vld [vmem:[%s7 + $0x60] sm:$0xff]
    %v1489 = vld [vmem:[%s7 + $0x68] sm:$0xff]
    %v1490 = vld [vmem:[%s7 + $0x70] sm:$0xff]
    %v1491 = vld [vmem:[%s7 + $0x78] sm:$0xff]
    %v1492 = vld [vmem:[%s8] sm:$0x1]
    %v1494 = vlaneseq
    %v1495 = vshrl.u32 %v1494, 7
    %v1496 = vsub.s32 0, %v1495
    %v1497 = vrot.slane %v1492, %v1496
    %1499 = vmatprep.subr.mxu0 0.0
    %1500 = vmatpush1.msra.mxu0 %v1476
    %1501 = vmatprep.subr.mxu0 0.0
    %1502 = vmatpush1.msra.mxu0 %v1477
    %1503 = vmatprep.subr.mxu0 0.0
    %1504 = vmatpush1.msra.mxu0 %v1478
    %1505 = vmatprep.subr.mxu0 0.0
    %1506 = vmatpush1.msra.mxu0 %v1479
    %1507 = vmatprep.subr.mxu0 0.0
    %1508 = vmatpush1.msra.mxu0 %v1480
    %1509 = vmatprep.subr.mxu0 0.0
    %1510 = vmatpush1.msra.mxu0 %v1481
    %1511 = vmatprep.subr.mxu0 0.0
    %1512 = vmatpush1.msra.mxu0 %v1482
    %1513 = vmatprep.subr.mxu0 0.0
    %1514 = vmatpush1.msra.mxu0 %v1483
    %1515 = vmatprep.subr.mxu0 0.0
    %1516 = vmatpush1.msra.mxu0 %v1484
    %1517 = vmatprep.subr.mxu0 0.0
    %1518 = vmatpush1.msra.mxu0 %v1485
    %1519 = vmatprep.subr.mxu0 0.0
    %1520 = vmatpush1.msra.mxu0 %v1486
    %1521 = vmatprep.subr.mxu0 0.0
    %1522 = vmatpush1.msra.mxu0 %v1487
    %1523 = vmatprep.subr.mxu0 0.0
    %1524 = vmatpush1.msra.mxu0 %v1488
    %1525 = vmatprep.subr.mxu0 0.0
    %1526 = vmatpush1.msra.mxu0 %v1489
    %1527 = vmatprep.subr.mxu0 0.0
    %1528 = vmatpush1.msra.mxu0 %v1490
    %1529 = vmatprep.subr.mxu0 0.0
    %1530 = vmatpush1.msra.mxu0 %v1491
    %1531 = vmatprep.subr.mxu0 0.0
    %1532 = vmatpush1.msra.mxu0 0.0
    %1533 = vmatprep.subr.mxu0 0.0
    %1534 = vmatpush1.msra.mxu0 0.0
    %1535 = vmatprep.subr.mxu0 0.0
    %1536 = vmatpush1.msra.mxu0 0.0
    %1537 = vmatprep.subr.mxu0 0.0
    %1538 = vmatpush1.msra.mxu0 0.0
    %1539 = vmatprep.subr.mxu0 0.0
    %1540 = vmatpush1.msra.mxu0 0.0
    %1541 = vmatprep.subr.mxu0 0.0
    %1542 = vmatpush1.msra.mxu0 0.0
    %1543 = vmatprep.subr.mxu0 0.0
    %1544 = vmatpush1.msra.mxu0 0.0
    %1545 = vmatprep.subr.mxu0 0.0
    %1546 = vmatpush1.msra.mxu0 0.0
    %1547 = vmatprep.subr.mxu0 0.0
    %1548 = vmatpush1.msra.mxu0 0.0
    %1549 = vmatprep.subr.mxu0 0.0
    %1550 = vmatpush1.msra.mxu0 0.0
    %1551 = vmatprep.subr.mxu0 0.0
    %1552 = vmatpush1.msra.mxu0 0.0
    %1553 = vmatprep.subr.mxu0 0.0
    %1554 = vmatpush1.msra.mxu0 0.0
    %1555 = vmatprep.subr.mxu0 0.0
    %1556 = vmatpush1.msra.mxu0 0.0
    %1557 = vmatprep.subr.mxu0 0.0
    %1558 = vmatpush1.msra.mxu0 0.0
    %1559 = vmatprep.subr.mxu0 0.0
    %1560 = vmatpush1.msra.mxu0 0.0
    %1561 = vmatprep.subr.mxu0 0.0
    %1562 = vmatpush1.msra.mxu0 0.0
    %1563 = vmatprep.mubr.f32.mxu0 0.0
    %1564 = vmatmul.mubr.f32.gmra.mrb[0].mxu0 %v1475
    %v1565 = vpop.f32.mrb[0].mxu0
    %v1566 = vadd.f32 %v1497, %v1565
    %v1567 = vpop.f32.mrb[0].mxu0
    %1568 = vdwg.mxu0
    %1569 = vmax.xlane.f32.xlu0 %v1566
    %v1570 = vpop.xlane.xlu0 %1569
    %v1571 = vsub.f32 %v1566, %v1570
    %v1572 = vmul.f32 %v1571, 1.442695
    %v1573 = vpow.pop %v1572
    %1574 = vadd.xlane.f32.xlu0 %v1573
    %v1575 = vpop.xlane.xlu0 %1574
    %v1576 = vlog2.pop %v1575
    %v1577 = vmul.f32 %v1576, 0.6931472
    %v1578 = vsub.f32 %v1571, %v1577
    %1579 = vst [vmem:[#allocation2] sm:$0xff] %v1578
    // Predicated region
    $region38: #{classifier_forward.1} parent=1 // pred_check
      _
    $region39: #{classifier_forward.1} parent=1 // pred_check_branch
      %1581 = sbr.rel (0) target = $region41
    $region40: #{classifier_forward.1} parent=1 // pred_region
      %s1583 = ssub.s32 128, 128
      %1584 = vsyncadd [#allocation3], %s1583
      %s1586 = sshll.u32 [#allocation2], 4
      %s1587 = int_to_ptr.vmem [resolvable:$true] %s1586
      %1589 = dma.vmem_to_hbm [thread:$0]  %s1587, 128, %s9, [#allocation3]
    $region41: #{classifier_forward.1} parent=1 // pred_fallthru
      _
    // Predicated region
    $region42: #{classifier_forward.1} parent=1 // pred_check
      _
    $region43: #{classifier_forward.1} parent=1 // pred_check_branch
      %1591 = sbr.rel (0) target = $region45
    $region44: #{classifier_forward.1} parent=1 // pred_region
      %1592 = dma.done [#allocation3], 128
    $region45: #{classifier_forward.1} parent=1 // pred_fallthru
      _
    %1593 = vsyncpa [#allocation3], 1

</llo_original>
